<compile_context>
chip_gen: v5e
topology: v5e:2x2
jax: 0.10.0
libtpu: 0.0.40
codegen_flags: <defaults>
</compile_context>

<pallas_src>
import math

import jax
import jax.numpy as jnp
from jax.experimental import pallas as pl
from jax.experimental.pallas import tpu as pltpu

LATENT = 128
NOISE = 128
BN_EPS = 1e-5


# --------------------------------------------------------------------------
# Hardware query helpers
# --------------------------------------------------------------------------

def _vmem_capacity_bytes():
    """Physical VMEM capacity of the current chip (conservative fallback)."""
    try:
        info = pltpu.get_tpu_info()
        cap = getattr(info, "vmem_capacity_bytes", None)
        if cap:
            return int(cap)
    except Exception:
        pass
    return 64 * 1024 * 1024  # v7x per-TC floor; v5e/v6e have 128 MiB


def _cost_estimate(batch):
    flops = 2 * batch * LATENT * LATENT * 5
    bytes_accessed = (batch * LATENT * 2            # bf16 noise in
                      + 5 * LATENT * LATENT * 2     # bf16 weights
                      + 5 * LATENT * 4              # f32 biases
                      + batch * LATENT * 4)         # f32 out
    return pl.CostEstimate(flops=flops, transcendentals=3 * LATENT,
                           bytes_accessed=bytes_accessed)


# --------------------------------------------------------------------------
# Path 1: fused whole-batch kernel (exact single-launch full-batch BN)
# --------------------------------------------------------------------------

def _bn_train(h):
    """BatchNorm1d training-mode normalize over the full (B, 128) block, f32.

    Single-pass moments (E[x], E[x^2]) read the same live vregs of `h`;
    var = E[x^2] - mean^2 clamped at 0 (activations are post-ReLU and
    spectrally normalized, so cancellation is benign here).
    """
    mean = jnp.mean(h, axis=0, keepdims=True)
    mean_sq = jnp.mean(h * h, axis=0, keepdims=True)
    var = jnp.maximum(mean_sq - mean * mean, 0.0)
    return (h - mean) * jax.lax.rsqrt(var + BN_EPS)


def _fused_kernel(x_ref, w_ref, b_ref, o_ref):
    """Whole 5-layer MLP with the batch resident in VMEM.

    x_ref: (B, 128) bf16   w_ref: (5, 128, 128) bf16 (in, out)
    b_ref: (5, 128) f32    o_ref: (B, 128) f32
    """
    bias = b_ref[...]                      # (5, 128) f32, single cheap load
    h = x_ref[...]                         # already bf16 (cast in producer)

    # Layers 1-3: Linear -> ReLU -> BatchNorm (full-batch stats)
    for i in range(3):
        z = jnp.dot(h, w_ref[i], preferred_element_type=jnp.float32) + bias[i:i + 1]
        h = _bn_train(jnp.maximum(z, 0.0)).astype(jnp.bfloat16)

    # Layer 4: Linear -> ReLU
    z = jnp.dot(h, w_ref[3], preferred_element_type=jnp.float32) + bias[3:4]
    h = jnp.maximum(z, 0.0).astype(jnp.bfloat16)

    # Layer 5: Linear (output kept f32 to match the module)
    o_ref[...] = jnp.dot(h, w_ref[4], preferred_element_type=jnp.float32) + bias[4:5]


def _fused_forward(noise_bf16, w_stack, b_stack):
    B = noise_bf16.shape[0]
    vmem = pl.BlockSpec(memory_space=pltpu.MemorySpace.VMEM)

    # Generation-aware VMEM budget: rough per-row residency (bf16 in, f32
    # matmul/BN intermediates, bf16 activation copy, f32 out) plus weights.
    weight_bytes = 5 * LATENT * LATENT * 2 + 5 * LATENT * 4
    need = B * LATENT * 16 + 2 * weight_bytes + (2 << 20)
    cap = _vmem_capacity_bytes()
    if need > cap * 3 // 4:
        raise ValueError(
            f"batch={B} does not fit the whole-batch-in-VMEM fused kernel on "
            f"this chip ({cap >> 20} MiB VMEM); call text_latent_g(..., "
            f"tile_rows=512) to use the batch-tiled multi-sweep path.")
    vmem_limit = int(min(max(need, 16 << 20), cap * 3 // 4))

    return pl.pallas_call(
        _fused_kernel,
        out_shape=jax.ShapeDtypeStruct((B, LATENT), jnp.float32),
        in_specs=[vmem, vmem, vmem],
        out_specs=vmem,
        compiler_params=pltpu.CompilerParams(vmem_limit_bytes=vmem_limit),
        cost_estimate=_cost_estimate(B),
    )(noise_bf16, w_stack, b_stack)


# --------------------------------------------------------------------------
# Path 2: batch-tiled multi-sweep path (two-pass BatchNorm, "parallel" grid)
# --------------------------------------------------------------------------

def _partial_moments(a):
    """Per-tile (sum, sum-of-squares) over the batch axis -> (1, 2, 128) f32."""
    s = jnp.sum(a, axis=0, keepdims=True)
    sq = jnp.sum(a * a, axis=0, keepdims=True)
    return jnp.concatenate([s, sq], axis=0)[None, :, :]


def _seg_first_kernel(x_ref, w_ref, b_ref, h_ref, part_ref):
    """Sweep 1: Linear1 -> ReLU; emit per-tile BN1 partial moments."""
    z = jnp.dot(x_ref[...], w_ref[...], preferred_element_type=jnp.float32) + b_ref[...]
    a = jnp.maximum(z, 0.0)
    h_ref[...] = a.astype(jnp.bfloat16)
    part_ref[...] = _partial_moments(a)


def _seg_mid_kernel(ss_ref, h_in_ref, w_ref, b_ref, h_out_ref, part_ref):
    """Sweeps 2-3: BN-normalize (precomputed scale/shift) -> Linear -> ReLU."""
    ss = ss_ref[...]                                           # (2, 128) f32
    hn = (h_in_ref[...].astype(jnp.float32) * ss[0:1] + ss[1:2]).astype(jnp.bfloat16)
    z = jnp.dot(hn, w_ref[...], preferred_element_type=jnp.float32) + b_ref[...]
    a = jnp.maximum(z, 0.0)
    h_out_ref[...] = a.astype(jnp.bfloat16)
    part_ref[...] = _partial_moments(a)


def _seg_last_kernel(ss_ref, h_in_ref, w4_ref, b4_ref, w5_ref, b5_ref, o_ref):
    """Sweep 4: BN3-normalize -> Linear4 -> ReLU -> Linear5."""
    ss = ss_ref[...]
    hn = (h_in_ref[...].astype(jnp.float32) * ss[0:1] + ss[1:2]).astype(jnp.bfloat16)
    z = jnp.dot(hn, w4_ref[...], preferred_element_type=jnp.float32) + b4_ref[...]
    h = jnp.maximum(z, 0.0).astype(jnp.bfloat16)
    o_ref[...] = jnp.dot(h, w5_ref[...], preferred_element_type=jnp.float32) + b5_ref[...]


def _bn_scale_shift(partials, batch):
    """Reduce per-tile (sum, sumsq) partials -> (2, 128) [scale; shift] f32."""
    s = jnp.sum(partials, axis=0)                       # (2, 128)
    mean = s[0] / batch
    var = jnp.maximum(s[1] / batch - mean * mean, 0.0)
    scale = jax.lax.rsqrt(var + BN_EPS)
    shift = -mean * scale
    return jnp.stack([scale, shift], axis=0)


def _tiled_forward(noise_bf16, w_stack, b_stack, tile_rows):
    B = noise_bf16.shape[0]
    if B % tile_rows != 0 or tile_rows % 8 != 0:
        raise ValueError(f"tile_rows={tile_rows} must divide batch={B} and be a multiple of 8")
    nt = B // tile_rows

    x_spec = pl.BlockSpec((tile_rows, LATENT), lambda i: (i, 0))
    h_spec = pl.BlockSpec((tile_rows, LATENT), lambda i: (i, 0))
    w_spec = pl.BlockSpec((LATENT, LATENT), lambda i: (0, 0))
    b_spec = pl.BlockSpec((1, LATENT), lambda i: (0, 0))
    ss_spec = pl.BlockSpec((2, LATENT), lambda i: (0, 0))
    part_spec = pl.BlockSpec((1, 2, LATENT), lambda i: (i, 0, 0))

    params = pltpu.CompilerParams(dimension_semantics=("parallel",))

    ws = [w_stack[i] for i in range(5)]          # (128, 128) bf16
    bs = [b_stack[i:i + 1] for i in range(5)]    # (1, 128) f32

    h_shape = jax.ShapeDtypeStruct((B, LATENT), jnp.bfloat16)
    part_shape = jax.ShapeDtypeStruct((nt, 2, LATENT), jnp.float32)

    # Sweep 1: Linear1 + ReLU, per-tile BN1 partial moments.
    h, part = pl.pallas_call(
        _seg_first_kernel,
        grid=(nt,),
        in_specs=[x_spec, w_spec, b_spec],
        out_specs=(h_spec, part_spec),
        out_shape=(h_shape, part_shape),
        compiler_params=params,
    )(noise_bf16, ws[0], bs[0])
    ss = _bn_scale_shift(part, B)

    # Sweeps 2-3: normalize + Linear + ReLU, next BN's partial moments.
    for layer in (1, 2):
        h, part = pl.pallas_call(
            _seg_mid_kernel,
            grid=(nt,),
            in_specs=[ss_spec, h_spec, w_spec, b_spec],
            out_specs=(h_spec, part_spec),
            out_shape=(h_shape, part_shape),
            compiler_params=params,
        )(ss, h, ws[layer], bs[layer])
        ss = _bn_scale_shift(part, B)

    # Sweep 4: normalize + Linear4 + ReLU + Linear5.
    out = pl.pallas_call(
        _seg_last_kernel,
        grid=(nt,),
        in_specs=[ss_spec, h_spec, w_spec, b_spec, w_spec, b_spec],
        out_specs=pl.BlockSpec((tile_rows, LATENT), lambda i: (i, 0)),
        out_shape=jax.ShapeDtypeStruct((B, LATENT), jnp.float32),
        compiler_params=params,
    )(ss, h, ws[3], bs[3], ws[4], bs[4])
    return out


# --------------------------------------------------------------------------
# Public entry point
# --------------------------------------------------------------------------

def text_latent_g(noise, w_stack, b_stack, *, tile_rows=0):
    """Text_Latent_G forward.

    noise:   (B, 128) float (cast to bf16 on the way in)
    w_stack: (5, 128, 128) bf16  pre-transposed (in, out) spectrally-normalized weights
    b_stack: (5, 128) f32        biases
    tile_rows == 0 -> fused whole-batch kernel (exact full-batch BN, 1 launch)
    tile_rows  > 0 -> 4-sweep batch-tiled path ("parallel" grid; use >=512 in prod)
    """
    noise_bf16 = noise.astype(jnp.bfloat16)
    if tile_rows == 0:
        return _fused_forward(noise_bf16, w_stack, b_stack)
    return _tiled_forward(noise_bf16, w_stack, b_stack, tile_rows)


# --------------------------------------------------------------------------
# Parameter setup (plain JAX glue)
# --------------------------------------------------------------------------

def spectral_normalize(w, key, n_power_iterations=1, eps=1e-12):
    """Spectral norm on a PyTorch-layout weight w of shape (out, in).

    # TODO(synk): PyTorch keeps a persistent `u` buffer across calls; a fresh
    # normalized-Gaussian u with one power iteration is used here instead.
    """
    out_dim, _ = w.shape
    u = jax.random.normal(key, (out_dim,), dtype=w.dtype)
    u = u / (jnp.linalg.norm(u) + eps)
    v = None
    for _ in range(n_power_iterations):
        v = w.T @ u
        v = v / (jnp.linalg.norm(v) + eps)
        u = w @ v
        u = u / (jnp.linalg.norm(u) + eps)
    sigma = u @ (w @ v)
    return w / sigma


def init_params(key):
    """PyTorch-style Linear init + spectral norm -> list of (W_t (in,out), b (out,)) f32."""
    dims = [(NOISE, LATENT)] + [(LATENT, LATENT)] * 4
    keys = jax.random.split(key, len(dims))
    params = []
    for (din, dout), k in zip(dims, keys):
        kw, kb, ku = jax.random.split(k, 3)
        bound = 1.0 / math.sqrt(din)
        w = jax.random.uniform(kw, (dout, din), jnp.float32, -bound, bound)
        b = jax.random.uniform(kb, (dout,), jnp.float32, -bound, bound)
        w = spectral_normalize(w, ku)
        params.append((w.T.astype(jnp.float32), b.astype(jnp.float32)))
    return params


def pack_params(params):
    """Stack per-layer weights/biases into two contiguous slabs (2 DMAs, not 10)."""
    assert all(w.shape == (LATENT, LATENT) for w, _ in params)
    w_stack = jnp.stack([w for w, _ in params]).astype(jnp.bfloat16)   # (5,128,128)
    b_stack = jnp.stack([b for _, b in params]).astype(jnp.float32)    # (5,128)
    return w_stack, b_stack


# --------------------------------------------------------------------------
# Pure-JAX f32 reference (training-mode forward of the PyTorch module)
# --------------------------------------------------------------------------

def reference_forward(noise, params):
    def bn(h):
        mean = jnp.mean(h, axis=0, keepdims=True)
        var = jnp.mean((h - mean) ** 2, axis=0, keepdims=True)
        return (h - mean) * jax.lax.rsqrt(var + BN_EPS)

    h = noise
    for i, (w_t, b) in enumerate(params):
        h = h @ w_t + b
        if i < 4:
            h = jnp.maximum(h, 0.0)
        if i < 3:
            h = bn(h)
    return h


# --------------------------------------------------------------------------
# Demo
# --------------------------------------------------------------------------

if __name__ == "__main__":
    root = jax.random.PRNGKey(0)
    k_noise, k_params = jax.random.split(root)

    # 512 rows keeps the MXU busy (>=256 rows per dot per review) while staying
    # small; noise produced directly in bf16 (what the kernel consumes).
    B = 512
    noise = jax.random.normal(k_noise, (B, NOISE), jnp.float32).astype(jnp.bfloat16)
    params = init_params(k_params)
    w_stack, b_stack = pack_params(params)

    fwd = jax.jit(text_latent_g, static_argnames=("tile_rows",))

    # Path 1: fused whole-batch kernel (exact full-batch BN).
    out_fused = jax.block_until_ready(fwd(noise, w_stack, b_stack))
    # Path 2: batch-tiled multi-sweep path (2 tiles of 256 rows for the demo;
    # use tile_rows >= 512 at production batch sizes).
    out_tiled = jax.block_until_ready(fwd(noise, w_stack, b_stack, tile_rows=256))

    ref = reference_forward(noise.astype(jnp.float32), params)

    for name, out in (("fused", out_fused), ("tiled", out_tiled)):
        assert out.shape == (B, LATENT), (name, out.shape)
        assert out.dtype == jnp.float32, (name, out.dtype)
        assert bool(jnp.all(jnp.isfinite(out))), name
        max_err = float(jnp.max(jnp.abs(out - ref)))
        assert max_err < 0.2, f"{name}: max abs error vs f32 reference: {max_err}"

    print("KERNEL_OK")
</pallas_src>

<mosaic_0001>
module attributes {stable_mosaic.version = 11 : i64} {
  func.func @_fused_kernel(%arg0: memref<512x128xbf16, #tpu.memory_space<vmem>>, %arg1: memref<5x128x128xbf16, #tpu.memory_space<vmem>>, %arg2: memref<5x128xf32, #tpu.memory_space<vmem>>, %arg3: memref<512x128xf32, #tpu.memory_space<vmem>>) attributes {dimension_semantics = [], scalar_prefetch = 0 : i64, scratch_operands = 0 : i64, tpu.core_type = #tpu.core_type<tc>} {
    %c0 = arith.constant 0 : index
    %c0_0 = arith.constant 0 : index
    %0 = vector.load %arg2[%c0, %c0_0] : memref<5x128xf32, #tpu.memory_space<vmem>>, vector<5x128xf32>
    %c0_1 = arith.constant 0 : index
    %c0_2 = arith.constant 0 : index
    %1 = vector.load %arg0[%c0_1, %c0_2] : memref<512x128xbf16, #tpu.memory_space<vmem>>, vector<512x128xbf16>
    %c0_3 = arith.constant 0 : index
    %c0_4 = arith.constant 0 : index
    %c0_5 = arith.constant 0 : index
    %2 = vector.load %arg1[%c0_3, %c0_4, %c0_5] : memref<5x128x128xbf16, #tpu.memory_space<vmem>>, vector<1x128x128xbf16>
    %3 = vector.shape_cast %2 : vector<1x128x128xbf16> to vector<128x128xbf16>
    %cst = arith.constant dense<0.000000e+00> : vector<512x128xf32>
    %4 = tpu.matmul %1, %3, %cst {dimension_numbers = #tpu.dot_dimension_numbers<[1], [0], [0], [1], [0, 0, 1, 1], [], []>} : vector<512x128xbf16>, vector<128x128xbf16>, vector<512x128xf32> -> vector<512x128xf32>
    %5 = vector.extract_strided_slice %0 {offsets = [0, 0], sizes = [1, 128], strides = [1, 1]} : vector<5x128xf32> to vector<1x128xf32>
    %6 = vector.broadcast %5 : vector<1x128xf32> to vector<512x128xf32>
    %7 = arith.addf %4, %6 : vector<512x128xf32>
    %cst_6 = arith.constant 0.000000e+00 : f32
    %8 = vector.broadcast %cst_6 : f32 to vector<512x128xf32>
    %9 = arith.maximumf %7, %8 : vector<512x128xf32>
    %cst_7 = arith.constant dense<0.000000e+00> : vector<128xf32>
    %10 = vector.multi_reduction <add>, %9, %cst_7 [0] : vector<512x128xf32> to vector<128xf32>
    %11 = vector.shape_cast %10 : vector<128xf32> to vector<1x128xf32>
    %cst_8 = arith.constant 5.120000e+02 : f32
    %12 = vector.broadcast %cst_8 : f32 to vector<1x128xf32>
    %13 = arith.divf %11, %12 : vector<1x128xf32>
    %14 = arith.mulf %9, %9 : vector<512x128xf32>
    %cst_9 = arith.constant dense<0.000000e+00> : vector<128xf32>
    %15 = vector.multi_reduction <add>, %14, %cst_9 [0] : vector<512x128xf32> to vector<128xf32>
    %16 = vector.shape_cast %15 : vector<128xf32> to vector<1x128xf32>
    %cst_10 = arith.constant 5.120000e+02 : f32
    %17 = vector.broadcast %cst_10 : f32 to vector<1x128xf32>
    %18 = arith.divf %16, %17 : vector<1x128xf32>
    %19 = arith.mulf %13, %13 : vector<1x128xf32>
    %20 = arith.subf %18, %19 : vector<1x128xf32>
    %cst_11 = arith.constant 0.000000e+00 : f32
    %21 = vector.broadcast %cst_11 : f32 to vector<1x128xf32>
    %22 = arith.maximumf %20, %21 : vector<1x128xf32>
    %23 = vector.broadcast %13 : vector<1x128xf32> to vector<512x128xf32>
    %24 = arith.subf %9, %23 : vector<512x128xf32>
    %cst_12 = arith.constant 9.99999974E-6 : f32
    %25 = vector.broadcast %cst_12 : f32 to vector<1x128xf32>
    %26 = arith.addf %22, %25 : vector<1x128xf32>
    %27 = math.rsqrt %26 : vector<1x128xf32>
    %28 = vector.broadcast %27 : vector<1x128xf32> to vector<512x128xf32>
    %29 = arith.mulf %24, %28 : vector<512x128xf32>
    %30 = arith.truncf %29 : vector<512x128xf32> to vector<512x128xbf16>
    %c1 = arith.constant 1 : index
    %c0_13 = arith.constant 0 : index
    %c0_14 = arith.constant 0 : index
    %31 = vector.load %arg1[%c1, %c0_13, %c0_14] : memref<5x128x128xbf16, #tpu.memory_space<vmem>>, vector<1x128x128xbf16>
    %32 = vector.shape_cast %31 : vector<1x128x128xbf16> to vector<128x128xbf16>
    %cst_15 = arith.constant dense<0.000000e+00> : vector<512x128xf32>
    %33 = tpu.matmul %30, %32, %cst_15 {dimension_numbers = #tpu.dot_dimension_numbers<[1], [0], [0], [1], [0, 0, 1, 1], [], []>} : vector<512x128xbf16>, vector<128x128xbf16>, vector<512x128xf32> -> vector<512x128xf32>
    %34 = vector.extract_strided_slice %0 {offsets = [1, 0], sizes = [1, 128], strides = [1, 1]} : vector<5x128xf32> to vector<1x128xf32>
    %35 = vector.broadcast %34 : vector<1x128xf32> to vector<512x128xf32>
    %36 = arith.addf %33, %35 : vector<512x128xf32>
    %cst_16 = arith.constant 0.000000e+00 : f32
    %37 = vector.broadcast %cst_16 : f32 to vector<512x128xf32>
    %38 = arith.maximumf %36, %37 : vector<512x128xf32>
    %cst_17 = arith.constant dense<0.000000e+00> : vector<128xf32>
    %39 = vector.multi_reduction <add>, %38, %cst_17 [0] : vector<512x128xf32> to vector<128xf32>
    %40 = vector.shape_cast %39 : vector<128xf32> to vector<1x128xf32>
    %cst_18 = arith.constant 5.120000e+02 : f32
    %41 = vector.broadcast %cst_18 : f32 to vector<1x128xf32>
    %42 = arith.divf %40, %41 : vector<1x128xf32>
    %43 = arith.mulf %38, %38 : vector<512x128xf32>
    %cst_19 = arith.constant dense<0.000000e+00> : vector<128xf32>
    %44 = vector.multi_reduction <add>, %43, %cst_19 [0] : vector<512x128xf32> to vector<128xf32>
    %45 = vector.shape_cast %44 : vector<128xf32> to vector<1x128xf32>
    %cst_20 = arith.constant 5.120000e+02 : f32
    %46 = vector.broadcast %cst_20 : f32 to vector<1x128xf32>
    %47 = arith.divf %45, %46 : vector<1x128xf32>
    %48 = arith.mulf %42, %42 : vector<1x128xf32>
    %49 = arith.subf %47, %48 : vector<1x128xf32>
    %cst_21 = arith.constant 0.000000e+00 : f32
    %50 = vector.broadcast %cst_21 : f32 to vector<1x128xf32>
    %51 = arith.maximumf %49, %50 : vector<1x128xf32>
    %52 = vector.broadcast %42 : vector<1x128xf32> to vector<512x128xf32>
    %53 = arith.subf %38, %52 : vector<512x128xf32>
    %cst_22 = arith.constant 9.99999974E-6 : f32
    %54 = vector.broadcast %cst_22 : f32 to vector<1x128xf32>
    %55 = arith.addf %51, %54 : vector<1x128xf32>
    %56 = math.rsqrt %55 : vector<1x128xf32>
    %57 = vector.broadcast %56 : vector<1x128xf32> to vector<512x128xf32>
    %58 = arith.mulf %53, %57 : vector<512x128xf32>
    %59 = arith.truncf %58 : vector<512x128xf32> to vector<512x128xbf16>
    %c2 = arith.constant 2 : index
    %c0_23 = arith.constant 0 : index
    %c0_24 = arith.constant 0 : index
    %60 = vector.load %arg1[%c2, %c0_23, %c0_24] : memref<5x128x128xbf16, #tpu.memory_space<vmem>>, vector<1x128x128xbf16>
    %61 = vector.shape_cast %60 : vector<1x128x128xbf16> to vector<128x128xbf16>
    %cst_25 = arith.constant dense<0.000000e+00> : vector<512x128xf32>
    %62 = tpu.matmul %59, %61, %cst_25 {dimension_numbers = #tpu.dot_dimension_numbers<[1], [0], [0], [1], [0, 0, 1, 1], [], []>} : vector<512x128xbf16>, vector<128x128xbf16>, vector<512x128xf32> -> vector<512x128xf32>
    %63 = vector.extract_strided_slice %0 {offsets = [2, 0], sizes = [1, 128], strides = [1, 1]} : vector<5x128xf32> to vector<1x128xf32>
    %64 = vector.broadcast %63 : vector<1x128xf32> to vector<512x128xf32>
    %65 = arith.addf %62, %64 : vector<512x128xf32>
    %cst_26 = arith.constant 0.000000e+00 : f32
    %66 = vector.broadcast %cst_26 : f32 to vector<512x128xf32>
    %67 = arith.maximumf %65, %66 : vector<512x128xf32>
    %cst_27 = arith.constant dense<0.000000e+00> : vector<128xf32>
    %68 = vector.multi_reduction <add>, %67, %cst_27 [0] : vector<512x128xf32> to vector<128xf32>
    %69 = vector.shape_cast %68 : vector<128xf32> to vector<1x128xf32>
    %cst_28 = arith.constant 5.120000e+02 : f32
    %70 = vector.broadcast %cst_28 : f32 to vector<1x128xf32>
    %71 = arith.divf %69, %70 : vector<1x128xf32>
    %72 = arith.mulf %67, %67 : vector<512x128xf32>
    %cst_29 = arith.constant dense<0.000000e+00> : vector<128xf32>
    %73 = vector.multi_reduction <add>, %72, %cst_29 [0] : vector<512x128xf32> to vector<128xf32>
    %74 = vector.shape_cast %73 : vector<128xf32> to vector<1x128xf32>
    %cst_30 = arith.constant 5.120000e+02 : f32
    %75 = vector.broadcast %cst_30 : f32 to vector<1x128xf32>
    %76 = arith.divf %74, %75 : vector<1x128xf32>
    %77 = arith.mulf %71, %71 : vector<1x128xf32>
    %78 = arith.subf %76, %77 : vector<1x128xf32>
    %cst_31 = arith.constant 0.000000e+00 : f32
    %79 = vector.broadcast %cst_31 : f32 to vector<1x128xf32>
    %80 = arith.maximumf %78, %79 : vector<1x128xf32>
    %81 = vector.broadcast %71 : vector<1x128xf32> to vector<512x128xf32>
    %82 = arith.subf %67, %81 : vector<512x128xf32>
    %cst_32 = arith.constant 9.99999974E-6 : f32
    %83 = vector.broadcast %cst_32 : f32 to vector<1x128xf32>
    %84 = arith.addf %80, %83 : vector<1x128xf32>
    %85 = math.rsqrt %84 : vector<1x128xf32>
    %86 = vector.broadcast %85 : vector<1x128xf32> to vector<512x128xf32>
    %87 = arith.mulf %82, %86 : vector<512x128xf32>
    %88 = arith.truncf %87 : vector<512x128xf32> to vector<512x128xbf16>
    %c3 = arith.constant 3 : index
    %c0_33 = arith.constant 0 : index
    %c0_34 = arith.constant 0 : index
    %89 = vector.load %arg1[%c3, %c0_33, %c0_34] : memref<5x128x128xbf16, #tpu.memory_space<vmem>>, vector<1x128x128xbf16>
    %90 = vector.shape_cast %89 : vector<1x128x128xbf16> to vector<128x128xbf16>
    %cst_35 = arith.constant dense<0.000000e+00> : vector<512x128xf32>
    %91 = tpu.matmul %88, %90, %cst_35 {dimension_numbers = #tpu.dot_dimension_numbers<[1], [0], [0], [1], [0, 0, 1, 1], [], []>} : vector<512x128xbf16>, vector<128x128xbf16>, vector<512x128xf32> -> vector<512x128xf32>
    %92 = vector.extract_strided_slice %0 {offsets = [3, 0], sizes = [1, 128], strides = [1, 1]} : vector<5x128xf32> to vector<1x128xf32>
    %93 = vector.broadcast %92 : vector<1x128xf32> to vector<512x128xf32>
    %94 = arith.addf %91, %93 : vector<512x128xf32>
    %cst_36 = arith.constant 0.000000e+00 : f32
    %95 = vector.broadcast %cst_36 : f32 to vector<512x128xf32>
    %96 = arith.maximumf %94, %95 : vector<512x128xf32>
    %97 = arith.truncf %96 : vector<512x128xf32> to vector<512x128xbf16>
    %c4 = arith.constant 4 : index
    %c0_37 = arith.constant 0 : index
    %c0_38 = arith.constant 0 : index
    %98 = vector.load %arg1[%c4, %c0_37, %c0_38] : memref<5x128x128xbf16, #tpu.memory_space<vmem>>, vector<1x128x128xbf16>
    %99 = vector.shape_cast %98 : vector<1x128x128xbf16> to vector<128x128xbf16>
    %cst_39 = arith.constant dense<0.000000e+00> : vector<512x128xf32>
    %100 = tpu.matmul %97, %99, %cst_39 {dimension_numbers = #tpu.dot_dimension_numbers<[1], [0], [0], [1], [0, 0, 1, 1], [], []>} : vector<512x128xbf16>, vector<128x128xbf16>, vector<512x128xf32> -> vector<512x128xf32>
    %101 = vector.extract_strided_slice %0 {offsets = [4, 0], sizes = [1, 128], strides = [1, 1]} : vector<5x128xf32> to vector<1x128xf32>
    %102 = vector.broadcast %101 : vector<1x128xf32> to vector<512x128xf32>
    %103 = arith.addf %100, %102 : vector<512x128xf32>
    %c0_40 = arith.constant 0 : index
    %c0_41 = arith.constant 0 : index
    %104 = vector.load %arg3[%c0_40, %c0_41] : memref<512x128xf32, #tpu.memory_space<vmem>>, vector<512x128xf32>
    tpu.vector_store %arg3[%c0_40, %c0_41], %103 {strides = array<i32>} : memref<512x128xf32, #tpu.memory_space<vmem>>, vector<512x128xf32>,
    return
  }
}

</mosaic_0001>

<llo_original>
// kernel: text_latent_g.1
$region0: #{text_latent_g.1}
  #allocation0 [shape = 'u32[]', space=smem, size = 0x4, offset = 0x4, fixed_abs, tag = 'smem constant byte address 0x4 - core index']
  #allocation1 [shape = 'u32[72,128]{1,0:T(1,128)}', space=vmem, size = 0x9000, scoped, tag = 'internal scratch']
  %s0 = inlined_call_operand.hbm [shape: bf16[512,128], index: 0, kind: input, shape index: {}]
  %s1 = inlined_call_operand.hbm [shape: bf16[5,128,128], index: 1, kind: input, shape index: {}]
  %s2 = inlined_call_operand.hbm [shape: f32[5,128], index: 2, kind: input, shape index: {}]
  %s3 = inlined_call_operand.hbm [shape: f32[512,128], index: 3, kind: output, shape index: {}]
  %s4 = sld [smem:[#allocation0]]
  $region34: #{text_latent_g.1} parent=0
    _
  %s6 = ssub.s32 1, %s4
  %s7 = scalar_select 0, %s6, %s4
  $region1: #{text_latent_g.1} parent=0
    #allocation2 [shape = 'u8[131072]{0}', space=vmem, size = 0x20000, scoped, tag = 'input window, operand 0, single buffered']
    #allocation3 [shape = 's32[1]{0}', space=sflag, size = 0x4, scoped, tag = 'scoped memory for text_latent_g.1']
    #allocation4 [shape = 's32[1]{0}', space=sflag, size = 0x4, scoped, tag = 'scoped memory for text_latent_g.1']
    #allocation5 [shape = 'u8[163840]{0}', space=vmem, size = 0x28000, scoped, tag = 'input window, operand 1, single buffered']
    #allocation6 [shape = 's32[1]{0}', space=sflag, size = 0x4, scoped, tag = 'scoped memory for text_latent_g.1']
    #allocation7 [shape = 'u8[4096]{0}', space=vmem, size = 0x1000, scoped, tag = 'input window, operand 2, single buffered']
    #allocation8 [shape = 'u8[262144]{0}', space=vmem, size = 0x40000, scoped, tag = 'output window, operand 0, single buffered']
    %8 = vsyncpa [#allocation3], 0
    %9 = vsyncpa [#allocation6], 0
    %10 = vsyncpa [#allocation4], 0
    // Predicated region
    $region2: #{text_latent_g.1} parent=1 // pred_check
      _
    $region3: #{text_latent_g.1} parent=1 // pred_check_branch
      %12 = sbr.rel (0) target = $region5
    $region4: #{text_latent_g.1} parent=1 // pred_region
      %14 = vsyncadd [#allocation3], 0
      %s15 = sshll.u32 %s0, 4
      %s16 = int_to_ptr.hbm [resolvable:$true] %s15
      %s17 = sshll.u32 [#allocation2], 4
      %s18 = int_to_ptr.vmem [resolvable:$true] %s17
      %23 = dma.hbm_to_vmem [thread:$0]  %s16, 4096, %s18, [#allocation3], 64, 64, 4
    $region5: #{text_latent_g.1} parent=1 // pred_fallthru
      _
    // Predicated region
    $region6: #{text_latent_g.1} parent=1 // pred_check
      _
    $region7: #{text_latent_g.1} parent=1 // pred_check_branch
      %25 = sbr.rel (0) target = $region9
    $region8: #{text_latent_g.1} parent=1 // pred_region
      %27 = vsyncadd [#allocation6], 0
      %s28 = sshll.u32 %s1, 4
      %s29 = int_to_ptr.hbm [resolvable:$true] %s28
      %s30 = sshll.u32 [#allocation5], 4
      %s31 = int_to_ptr.vmem [resolvable:$true] %s30
      %36 = dma.hbm_to_vmem [thread:$0]  %s29, 5120, %s31, [#allocation6], 64, 64, 4
    $region9: #{text_latent_g.1} parent=1 // pred_fallthru
      _
    // Predicated region
    $region10: #{text_latent_g.1} parent=1 // pred_check
      _
    $region11: #{text_latent_g.1} parent=1 // pred_check_branch
      %38 = sbr.rel (0) target = $region13
    $region12: #{text_latent_g.1} parent=1 // pred_region
      %40 = vsyncadd [#allocation6], 0
      %s42 = sshll.u32 %s2, 4
      %s43 = int_to_ptr.hbm [resolvable:$true] %s42
      %s44 = sshll.u32 [#allocation7], 4
      %s45 = int_to_ptr.vmem [resolvable:$true] %s44
      %47 = dma.hbm_to_vmem [thread:$0]  %s43, 128, %s45, [#allocation6]
    $region13: #{text_latent_g.1} parent=1 // pred_fallthru
      _
    // Predicated region
    $region14: #{text_latent_g.1} parent=1 // pred_check
      _
    $region15: #{text_latent_g.1} parent=1 // pred_check_branch
      %49 = sbr.rel (0) target = $region17
    $region16: #{text_latent_g.1} parent=1 // pred_region
      %51 = dma.done [#allocation3], 4096
    $region17: #{text_latent_g.1} parent=1 // pred_fallthru
      _
    // Predicated region
    $region18: #{text_latent_g.1} parent=1 // pred_check
      _
    $region19: #{text_latent_g.1} parent=1 // pred_check_branch
      %53 = sbr.rel (0) target = $region21
    $region20: #{text_latent_g.1} parent=1 // pred_region
      %55 = dma.done [#allocation6], 5120
    $region21: #{text_latent_g.1} parent=1 // pred_fallthru
      _
    // Predicated region
    $region22: #{text_latent_g.1} parent=1 // pred_check
      _
    $region23: #{text_latent_g.1} parent=1 // pred_check_branch
      %57 = sbr.rel (0) target = $region25
    $region24: #{text_latent_g.1} parent=1 // pred_region
      %59 = dma.done [#allocation6], 128
    $region25: #{text_latent_g.1} parent=1 // pred_fallthru
      _
    %v60 = vld [vmem:[#allocation7] sm:$0x1f]
    %v61 = vld [vmem:[#allocation2] sm:$0xf]
    %v62 = vld [vmem:[#allocation2 + $0x4] sm:$0xf]
    %v63 = vld [vmem:[#allocation2 + $0x8] sm:$0xf]
    %v64 = vld [vmem:[#allocation2 + $0xc] sm:$0xf]
    %v65 = vld [vmem:[#allocation2 + $0x10] sm:$0xf]
    %v66 = vld [vmem:[#allocation2 + $0x14] sm:$0xf]
    %v67 = vld [vmem:[#allocation2 + $0x18] sm:$0xf]
    %v68 = vld [vmem:[#allocation2 + $0x1c] sm:$0xf]
    %v69 = vld [vmem:[#allocation2 + $0x20] sm:$0xf]
    %v70 = vld [vmem:[#allocation2 + $0x24] sm:$0xf]
    %v71 = vld [vmem:[#allocation2 + $0x28] sm:$0xf]
    %v72 = vld [vmem:[#allocation2 + $0x2c] sm:$0xf]
    %v73 = vld [vmem:[#allocation2 + $0x30] sm:$0xf]
    %v74 = vld [vmem:[#allocation2 + $0x34] sm:$0xf]
    %v75 = vld [vmem:[#allocation2 + $0x38] sm:$0xf]
    %v76 = vld [vmem:[#allocation2 + $0x3c] sm:$0xf]
    %v77 = vld [vmem:[#allocation2 + $0x40] sm:$0xf]
    %v78 = vld [vmem:[#allocation2 + $0x44] sm:$0xf]
    %v79 = vld [vmem:[#allocation2 + $0x48] sm:$0xf]
    %v80 = vld [vmem:[#allocation2 + $0x4c] sm:$0xf]
    %v81 = vld [vmem:[#allocation2 + $0x50] sm:$0xf]
    %v82 = vld [vmem:[#allocation2 + $0x54] sm:$0xf]
    %v83 = vld [vmem:[#allocation2 + $0x58] sm:$0xf]
    %v84 = vld [vmem:[#allocation2 + $0x5c] sm:$0xf]
    %v85 = vld [vmem:[#allocation2 + $0x60] sm:$0xf]
    %v86 = vld [vmem:[#allocation2 + $0x64] sm:$0xf]
    %v87 = vld [vmem:[#allocation2 + $0x68] sm:$0xf]
    %v88 = vld [vmem:[#allocation2 + $0x6c] sm:$0xf]
    %v89 = vld [vmem:[#allocation2 + $0x70] sm:$0xf]
    %v90 = vld [vmem:[#allocation2 + $0x74] sm:$0xf]
    %v91 = vld [vmem:[#allocation2 + $0x78] sm:$0xf]
    %v92 = vld [vmem:[#allocation2 + $0x7c] sm:$0xf]
    %v93 = vld [vmem:[#allocation2 + $0x80] sm:$0xf]
    %v94 = vld [vmem:[#allocation2 + $0x84] sm:$0xf]
    %v95 = vld [vmem:[#allocation2 + $0x88] sm:$0xf]
    %v96 = vld [vmem:[#allocation2 + $0x8c] sm:$0xf]
    %v97 = vld [vmem:[#allocation2 + $0x90] sm:$0xf]
    %v98 = vld [vmem:[#allocation2 + $0x94] sm:$0xf]
    %v99 = vld [vmem:[#allocation2 + $0x98] sm:$0xf]
    %v100 = vld [vmem:[#allocation2 + $0x9c] sm:$0xf]
    %v101 = vld [vmem:[#allocation2 + $0xa0] sm:$0xf]
    %v102 = vld [vmem:[#allocation2 + $0xa4] sm:$0xf]
    %v103 = vld [vmem:[#allocation2 + $0xa8] sm:$0xf]
    %v104 = vld [vmem:[#allocation2 + $0xac] sm:$0xf]
    %v105 = vld [vmem:[#allocation2 + $0xb0] sm:$0xf]
    %v106 = vld [vmem:[#allocation2 + $0xb4] sm:$0xf]
    %v107 = vld [vmem:[#allocation2 + $0xb8] sm:$0xf]
    %v108 = vld [vmem:[#allocation2 + $0xbc] sm:$0xf]
    %v109 = vld [vmem:[#allocation2 + $0xc0] sm:$0xf]
    %v110 = vld [vmem:[#allocation2 + $0xc4] sm:$0xf]
    %v111 = vld [vmem:[#allocation2 + $0xc8] sm:$0xf]
    %v112 = vld [vmem:[#allocation2 + $0xcc] sm:$0xf]
    %v113 = vld [vmem:[#allocation2 + $0xd0] sm:$0xf]
    %v114 = vld [vmem:[#allocation2 + $0xd4] sm:$0xf]
    %v115 = vld [vmem:[#allocation2 + $0xd8] sm:$0xf]
    %v116 = vld [vmem:[#allocation2 + $0xdc] sm:$0xf]
    %v117 = vld [vmem:[#allocation2 + $0xe0] sm:$0xf]
    %v118 = vld [vmem:[#allocation2 + $0xe4] sm:$0xf]
    %v119 = vld [vmem:[#allocation2 + $0xe8] sm:$0xf]
    %v120 = vld [vmem:[#allocation2 + $0xec] sm:$0xf]
    %v121 = vld [vmem:[#allocation2 + $0xf0] sm:$0xf]
    %v122 = vld [vmem:[#allocation2 + $0xf4] sm:$0xf]
    %v123 = vld [vmem:[#allocation2 + $0xf8] sm:$0xf]
    %v124 = vld [vmem:[#allocation2 + $0xfc] sm:$0xf]
    %v125 = vld [vmem:[#allocation5] sm:$0xf]
    %v126 = vld [vmem:[#allocation5 + $0x4] sm:$0xf]
    %v127 = vld [vmem:[#allocation5 + $0x8] sm:$0xf]
    %v128 = vld [vmem:[#allocation5 + $0xc] sm:$0xf]
    %v129 = vld [vmem:[#allocation5 + $0x10] sm:$0xf]
    %v130 = vld [vmem:[#allocation5 + $0x14] sm:$0xf]
    %v131 = vld [vmem:[#allocation5 + $0x18] sm:$0xf]
    %v132 = vld [vmem:[#allocation5 + $0x1c] sm:$0xf]
    %v133 = vld [vmem:[#allocation5 + $0x20] sm:$0xf]
    %v134 = vld [vmem:[#allocation5 + $0x24] sm:$0xf]
    %v135 = vld [vmem:[#allocation5 + $0x28] sm:$0xf]
    %v136 = vld [vmem:[#allocation5 + $0x2c] sm:$0xf]
    %v137 = vld [vmem:[#allocation5 + $0x30] sm:$0xf]
    %v138 = vld [vmem:[#allocation5 + $0x34] sm:$0xf]
    %v139 = vld [vmem:[#allocation5 + $0x38] sm:$0xf]
    %v140 = vld [vmem:[#allocation5 + $0x3c] sm:$0xf]
    %v141 = vperm.slane %v60, 0
    %v206 = vunpack.c.l.b16 %v61
    %v207 = vunpack.c.l.b16 %v62
    %v208 = vunpack.c.l.b16 %v63
    %v209 = vunpack.c.l.b16 %v64
    %v210 = vunpack.c.l.b16 %v65
    %v211 = vunpack.c.l.b16 %v66
    %v212 = vunpack.c.l.b16 %v67
    %v213 = vunpack.c.l.b16 %v68
    %v214 = vunpack.c.l.b16 %v69
    %v215 = vunpack.c.l.b16 %v70
    %v216 = vunpack.c.l.b16 %v71
    %v217 = vunpack.c.l.b16 %v72
    %v218 = vunpack.c.l.b16 %v73
    %v219 = vunpack.c.l.b16 %v74
    %v220 = vunpack.c.l.b16 %v75
    %v221 = vunpack.c.l.b16 %v76
    %v222 = vunpack.c.l.b16 %v77
    %v223 = vunpack.c.l.b16 %v78
    %v224 = vunpack.c.l.b16 %v79
    %v225 = vunpack.c.l.b16 %v80
    %v226 = vunpack.c.l.b16 %v81
    %v227 = vunpack.c.l.b16 %v82
    %v228 = vunpack.c.l.b16 %v83
    %v229 = vunpack.c.l.b16 %v84
    %v230 = vunpack.c.l.b16 %v85
    %v231 = vunpack.c.l.b16 %v86
    %v232 = vunpack.c.l.b16 %v87
    %v233 = vunpack.c.l.b16 %v88
    %v234 = vunpack.c.l.b16 %v89
    %v235 = vunpack.c.l.b16 %v90
    %v236 = vunpack.c.l.b16 %v91
    %v237 = vunpack.c.l.b16 %v92
    %v238 = vunpack.c.l.b16 %v93
    %v239 = vunpack.c.l.b16 %v94
    %v240 = vunpack.c.l.b16 %v95
    %v241 = vunpack.c.l.b16 %v96
    %v242 = vunpack.c.l.b16 %v97
    %v243 = vunpack.c.l.b16 %v98
    %v244 = vunpack.c.l.b16 %v99
    %v245 = vunpack.c.l.b16 %v100
    %v246 = vunpack.c.l.b16 %v101
    %v247 = vunpack.c.l.b16 %v102
    %v248 = vunpack.c.l.b16 %v103
    %v249 = vunpack.c.l.b16 %v104
    %v250 = vunpack.c.l.b16 %v105
    %v251 = vunpack.c.l.b16 %v106
    %v252 = vunpack.c.l.b16 %v107
    %v253 = vunpack.c.l.b16 %v108
    %v254 = vunpack.c.l.b16 %v109
    %v255 = vunpack.c.l.b16 %v110
    %v256 = vunpack.c.l.b16 %v111
    %v257 = vunpack.c.l.b16 %v112
    %v258 = vunpack.c.l.b16 %v113
    %v259 = vunpack.c.l.b16 %v114
    %v260 = vunpack.c.l.b16 %v115
    %v261 = vunpack.c.l.b16 %v116
    %v262 = vunpack.c.l.b16 %v117
    %v263 = vunpack.c.l.b16 %v118
    %v264 = vunpack.c.l.b16 %v119
    %v265 = vunpack.c.l.b16 %v120
    %v266 = vunpack.c.l.b16 %v121
    %v267 = vunpack.c.l.b16 %v122
    %v268 = vunpack.c.l.b16 %v123
    %v269 = vunpack.c.l.b16 %v124
    %v270 = vpack.c.b16 %v207, %v206
    %v271 = vpack.c.b16 %v209, %v208
    %v272 = vpack.c.b16 %v211, %v210
    %v273 = vpack.c.b16 %v213, %v212
    %v274 = vpack.c.b16 %v215, %v214
    %v275 = vpack.c.b16 %v217, %v216
    %v276 = vpack.c.b16 %v219, %v218
    %v277 = vpack.c.b16 %v221, %v220
    %v278 = vpack.c.b16 %v223, %v222
    %v279 = vpack.c.b16 %v225, %v224
    %v280 = vpack.c.b16 %v227, %v226
    %v281 = vpack.c.b16 %v229, %v228
    %v282 = vpack.c.b16 %v231, %v230
    %v283 = vpack.c.b16 %v233, %v232
    %v284 = vpack.c.b16 %v235, %v234
    %v285 = vpack.c.b16 %v237, %v236
    %v286 = vpack.c.b16 %v239, %v238
    %v287 = vpack.c.b16 %v241, %v240
    %v288 = vpack.c.b16 %v243, %v242
    %v289 = vpack.c.b16 %v245, %v244
    %v290 = vpack.c.b16 %v247, %v246
    %v291 = vpack.c.b16 %v249, %v248
    %v292 = vpack.c.b16 %v251, %v250
    %v293 = vpack.c.b16 %v253, %v252
    %v294 = vpack.c.b16 %v255, %v254
    %v295 = vpack.c.b16 %v257, %v256
    %v296 = vpack.c.b16 %v259, %v258
    %v297 = vpack.c.b16 %v261, %v260
    %v298 = vpack.c.b16 %v263, %v262
    %v299 = vpack.c.b16 %v265, %v264
    %v300 = vpack.c.b16 %v267, %v266
    %v301 = vpack.c.b16 %v269, %v268
    %v350 = vunpack.c.l.b16 %v125
    %v351 = vunpack.c.l.b16 %v126
    %v352 = vunpack.c.l.b16 %v127
    %v353 = vunpack.c.l.b16 %v128
    %v354 = vunpack.c.l.b16 %v129
    %v355 = vunpack.c.l.b16 %v130
    %v356 = vunpack.c.l.b16 %v131
    %v357 = vunpack.c.l.b16 %v132
    %v358 = vunpack.c.l.b16 %v133
    %v359 = vunpack.c.l.b16 %v134
    %v360 = vunpack.c.l.b16 %v135
    %v361 = vunpack.c.l.b16 %v136
    %v362 = vunpack.c.l.b16 %v137
    %v363 = vunpack.c.l.b16 %v138
    %v364 = vunpack.c.l.b16 %v139
    %v365 = vunpack.c.l.b16 %v140
    %v366 = vpack.c.b16 %v351, %v350
    %v367 = vpack.c.b16 %v353, %v352
    %v368 = vpack.c.b16 %v355, %v354
    %v369 = vpack.c.b16 %v357, %v356
    %v370 = vpack.c.b16 %v359, %v358
    %v371 = vpack.c.b16 %v361, %v360
    %v372 = vpack.c.b16 %v363, %v362
    %v373 = vpack.c.b16 %v365, %v364
    %382 = vmatpush.bf16.msra.mxu0 %v373
    %383 = vmatpush.bf16.msra.mxu0 %v372
    %384 = vmatpush.bf16.msra.mxu0 %v371
    %385 = vmatpush.bf16.msra.mxu0 %v370
    %386 = vmatpush.bf16.msra.mxu0 %v369
    %387 = vmatpush.bf16.msra.mxu0 %v368
    %388 = vmatpush.bf16.msra.mxu0 %v367
    %389 = vmatpush.bf16.msra.mxu0 %v366
    %390 = vmatmul.bf16.gmra.mxu0 %v270
    %v391 = vpop.f32.mrf.mxu0
    %v392 = vadd.f32 %v141, %v391
    %v393 = vpop.f32.mrf.mxu0
    %v394 = vadd.f32 %v141, %v393
    %395 = vmatmul.bf16.gmra.mxu0 %v271
    %v396 = vpop.f32.mrf.mxu0
    %v397 = vadd.f32 %v141, %v396
    %v398 = vpop.f32.mrf.mxu0
    %v399 = vadd.f32 %v141, %v398
    %400 = vmatmul.bf16.gmra.mxu0 %v272
    %v401 = vpop.f32.mrf.mxu0
    %v402 = vadd.f32 %v141, %v401
    %v403 = vpop.f32.mrf.mxu0
    %v404 = vadd.f32 %v141, %v403
    %405 = vmatmul.bf16.gmra.mxu0 %v273
    %v406 = vpop.f32.mrf.mxu0
    %v407 = vadd.f32 %v141, %v406
    %v408 = vpop.f32.mrf.mxu0
    %v409 = vadd.f32 %v141, %v408
    %410 = vmatmul.bf16.gmra.mxu0 %v274
    %v411 = vpop.f32.mrf.mxu0
    %v412 = vadd.f32 %v141, %v411
    %v413 = vpop.f32.mrf.mxu0
    %v414 = vadd.f32 %v141, %v413
    %415 = vmatmul.bf16.gmra.mxu0 %v275
    %v416 = vpop.f32.mrf.mxu0
    %v417 = vadd.f32 %v141, %v416
    %v418 = vpop.f32.mrf.mxu0
    %v419 = vadd.f32 %v141, %v418
    %420 = vmatmul.bf16.gmra.mxu0 %v276
    %v421 = vpop.f32.mrf.mxu0
    %v422 = vadd.f32 %v141, %v421
    %v423 = vpop.f32.mrf.mxu0
    %v424 = vadd.f32 %v141, %v423
    %425 = vmatmul.bf16.gmra.mxu0 %v277
    %v426 = vpop.f32.mrf.mxu0
    %v427 = vadd.f32 %v141, %v426
    %v428 = vpop.f32.mrf.mxu0
    %v429 = vadd.f32 %v141, %v428
    %430 = vmatmul.bf16.gmra.mxu0 %v278
    %v431 = vpop.f32.mrf.mxu0
    %v432 = vadd.f32 %v141, %v431
    %v433 = vpop.f32.mrf.mxu0
    %v434 = vadd.f32 %v141, %v433
    %435 = vmatmul.bf16.gmra.mxu0 %v279
    %v436 = vpop.f32.mrf.mxu0
    %v437 = vadd.f32 %v141, %v436
    %v438 = vpop.f32.mrf.mxu0
    %v439 = vadd.f32 %v141, %v438
    %440 = vmatmul.bf16.gmra.mxu0 %v280
    %v441 = vpop.f32.mrf.mxu0
    %v442 = vadd.f32 %v141, %v441
    %v443 = vpop.f32.mrf.mxu0
    %v444 = vadd.f32 %v141, %v443
    %445 = vmatmul.bf16.gmra.mxu0 %v281
    %v446 = vpop.f32.mrf.mxu0
    %v447 = vadd.f32 %v141, %v446
    %v448 = vpop.f32.mrf.mxu0
    %v449 = vadd.f32 %v141, %v448
    %450 = vmatmul.bf16.gmra.mxu0 %v282
    %v451 = vpop.f32.mrf.mxu0
    %v452 = vadd.f32 %v141, %v451
    %v453 = vpop.f32.mrf.mxu0
    %v454 = vadd.f32 %v141, %v453
    %455 = vmatmul.bf16.gmra.mxu0 %v283
    %v456 = vpop.f32.mrf.mxu0
    %v457 = vadd.f32 %v141, %v456
    %v458 = vpop.f32.mrf.mxu0
    %v459 = vadd.f32 %v141, %v458
    %460 = vmatmul.bf16.gmra.mxu0 %v284
    %v461 = vpop.f32.mrf.mxu0
    %v462 = vadd.f32 %v141, %v461
    %v463 = vpop.f32.mrf.mxu0
    %v464 = vadd.f32 %v141, %v463
    %465 = vmatmul.bf16.gmra.mxu0 %v285
    %v466 = vpop.f32.mrf.mxu0
    %v467 = vadd.f32 %v141, %v466
    %v468 = vpop.f32.mrf.mxu0
    %v469 = vadd.f32 %v141, %v468
    %470 = vmatmul.bf16.gmra.mxu0 %v286
    %v471 = vpop.f32.mrf.mxu0
    %v472 = vadd.f32 %v141, %v471
    %v473 = vpop.f32.mrf.mxu0
    %v474 = vadd.f32 %v141, %v473
    %475 = vmatmul.bf16.gmra.mxu0 %v287
    %v476 = vpop.f32.mrf.mxu0
    %v477 = vadd.f32 %v141, %v476
    %v478 = vpop.f32.mrf.mxu0
    %v479 = vadd.f32 %v141, %v478
    %480 = vmatmul.bf16.gmra.mxu0 %v288
    %v481 = vpop.f32.mrf.mxu0
    %v482 = vadd.f32 %v141, %v481
    %v483 = vpop.f32.mrf.mxu0
    %v484 = vadd.f32 %v141, %v483
    %485 = vmatmul.bf16.gmra.mxu0 %v289
    %v486 = vpop.f32.mrf.mxu0
    %v487 = vadd.f32 %v141, %v486
    %v488 = vpop.f32.mrf.mxu0
    %v489 = vadd.f32 %v141, %v488
    %490 = vmatmul.bf16.gmra.mxu0 %v290
    %v491 = vpop.f32.mrf.mxu0
    %v492 = vadd.f32 %v141, %v491
    %v493 = vpop.f32.mrf.mxu0
    %v494 = vadd.f32 %v141, %v493
    %495 = vmatmul.bf16.gmra.mxu0 %v291
    %v496 = vpop.f32.mrf.mxu0
    %v497 = vadd.f32 %v141, %v496
    %v498 = vpop.f32.mrf.mxu0
    %v499 = vadd.f32 %v141, %v498
    %500 = vmatmul.bf16.gmra.mxu0 %v292
    %v501 = vpop.f32.mrf.mxu0
    %v502 = vadd.f32 %v141, %v501
    %v503 = vpop.f32.mrf.mxu0
    %v504 = vadd.f32 %v141, %v503
    %505 = vmatmul.bf16.gmra.mxu0 %v293
    %v506 = vpop.f32.mrf.mxu0
    %v507 = vadd.f32 %v141, %v506
    %v508 = vpop.f32.mrf.mxu0
    %v509 = vadd.f32 %v141, %v508
    %510 = vmatmul.bf16.gmra.mxu0 %v294
    %v511 = vpop.f32.mrf.mxu0
    %v512 = vadd.f32 %v141, %v511
    %v513 = vpop.f32.mrf.mxu0
    %v514 = vadd.f32 %v141, %v513
    %515 = vmatmul.bf16.gmra.mxu0 %v295
    %v516 = vpop.f32.mrf.mxu0
    %v517 = vadd.f32 %v141, %v516
    %v518 = vpop.f32.mrf.mxu0
    %v519 = vadd.f32 %v141, %v518
    %520 = vmatmul.bf16.gmra.mxu0 %v296
    %v521 = vpop.f32.mrf.mxu0
    %v522 = vadd.f32 %v141, %v521
    %v523 = vpop.f32.mrf.mxu0
    %v524 = vadd.f32 %v141, %v523
    %525 = vmatmul.bf16.gmra.mxu0 %v297
    %v526 = vpop.f32.mrf.mxu0
    %v527 = vadd.f32 %v141, %v526
    %v528 = vpop.f32.mrf.mxu0
    %v529 = vadd.f32 %v141, %v528
    %530 = vmatmul.bf16.gmra.mxu0 %v298
    %v531 = vpop.f32.mrf.mxu0
    %v532 = vadd.f32 %v141, %v531
    %v533 = vpop.f32.mrf.mxu0
    %v534 = vadd.f32 %v141, %v533
    %535 = vmatmul.bf16.gmra.mxu0 %v299
    %v536 = vpop.f32.mrf.mxu0
    %v537 = vadd.f32 %v141, %v536
    %v538 = vpop.f32.mrf.mxu0
    %v539 = vadd.f32 %v141, %v538
    %540 = vmatmul.bf16.gmra.mxu0 %v300
    %v541 = vpop.f32.mrf.mxu0
    %v542 = vadd.f32 %v141, %v541
    %v543 = vpop.f32.mrf.mxu0
    %v544 = vadd.f32 %v141, %v543
    %545 = vmatmul.bf16.gmra.mxu0 %v301
    %v546 = vpop.f32.mrf.mxu0
    %v547 = vadd.f32 %v141, %v546
    %v548 = vpop.f32.mrf.mxu0
    %v549 = vadd.f32 %v141, %v548
    %550 = vdwg.mxu0
    %v551 = vmax.f32 %v392, 0.0
    %v552 = vmax.f32 %v394, 0.0
    %v553 = vmax.f32 %v397, 0.0
    %v554 = vmax.f32 %v399, 0.0
    %v555 = vmax.f32 %v402, 0.0
    %v556 = vmax.f32 %v404, 0.0
    %v557 = vmax.f32 %v407, 0.0
    %v558 = vmax.f32 %v409, 0.0
    %v559 = vmax.f32 %v412, 0.0
    %v560 = vmax.f32 %v414, 0.0
    %v561 = vmax.f32 %v417, 0.0
    %v562 = vmax.f32 %v419, 0.0
    %v563 = vmax.f32 %v422, 0.0
    %v564 = vmax.f32 %v424, 0.0
    %v565 = vmax.f32 %v427, 0.0
    %v566 = vmax.f32 %v429, 0.0
    %v567 = vmax.f32 %v432, 0.0
    %v568 = vmax.f32 %v434, 0.0
    %v569 = vmax.f32 %v437, 0.0
    %v570 = vmax.f32 %v439, 0.0
    %v571 = vmax.f32 %v442, 0.0
    %v572 = vmax.f32 %v444, 0.0
    %v573 = vmax.f32 %v447, 0.0
    %v574 = vmax.f32 %v449, 0.0
    %v575 = vmax.f32 %v452, 0.0
    %v576 = vmax.f32 %v454, 0.0
    %v577 = vmax.f32 %v457, 0.0
    %v578 = vmax.f32 %v459, 0.0
    %v579 = vmax.f32 %v462, 0.0
    %v580 = vmax.f32 %v464, 0.0
    %v581 = vmax.f32 %v467, 0.0
    %v582 = vmax.f32 %v469, 0.0
    %v583 = vmax.f32 %v472, 0.0
    %v584 = vmax.f32 %v474, 0.0
    %v585 = vmax.f32 %v477, 0.0
    %v586 = vmax.f32 %v479, 0.0
    %v587 = vmax.f32 %v482, 0.0
    %v588 = vmax.f32 %v484, 0.0
    %v589 = vmax.f32 %v487, 0.0
    %v590 = vmax.f32 %v489, 0.0
    %v591 = vmax.f32 %v492, 0.0
    %v592 = vmax.f32 %v494, 0.0
    %v593 = vmax.f32 %v497, 0.0
    %v594 = vmax.f32 %v499, 0.0
    %v595 = vmax.f32 %v502, 0.0
    %v596 = vmax.f32 %v504, 0.0
    %v597 = vmax.f32 %v507, 0.0
    %v598 = vmax.f32 %v509, 0.0
    %v599 = vmax.f32 %v512, 0.0
    %v600 = vmax.f32 %v514, 0.0
    %v601 = vmax.f32 %v517, 0.0
    %v602 = vmax.f32 %v519, 0.0
    %v603 = vmax.f32 %v522, 0.0
    %v604 = vmax.f32 %v524, 0.0
    %v605 = vmax.f32 %v527, 0.0
    %v606 = vmax.f32 %v529, 0.0
    %v607 = vmax.f32 %v532, 0.0
    %v608 = vmax.f32 %v534, 0.0
    %v609 = vmax.f32 %v537, 0.0
    %v610 = vmax.f32 %v539, 0.0
    %v611 = vmax.f32 %v542, 0.0
    %v612 = vmax.f32 %v544, 0.0
    %v613 = vmax.f32 %v547, 0.0
    %v614 = vmax.f32 %v549, 0.0
    %v615 = vadd.f32 %v551, %v552
    %v616 = vadd.f32 %v615, %v553
    %v617 = vadd.f32 %v616, %v554
    %v618 = vadd.f32 %v617, %v555
    %v619 = vadd.f32 %v618, %v556
    %v620 = vadd.f32 %v619, %v557
    %v621 = vadd.f32 %v620, %v558
    %v622 = vadd.f32 %v621, %v559
    %v623 = vadd.f32 %v622, %v560
    %v624 = vadd.f32 %v623, %v561
    %v625 = vadd.f32 %v624, %v562
    %v626 = vadd.f32 %v625, %v563
    %v627 = vadd.f32 %v626, %v564
    %v628 = vadd.f32 %v627, %v565
    %v629 = vadd.f32 %v628, %v566
    %v630 = vadd.f32 %v629, %v567
    %v631 = vadd.f32 %v630, %v568
    %v632 = vadd.f32 %v631, %v569
    %v633 = vadd.f32 %v632, %v570
    %v634 = vadd.f32 %v633, %v571
    %v635 = vadd.f32 %v634, %v572
    %v636 = vadd.f32 %v635, %v573
    %v637 = vadd.f32 %v636, %v574
    %v638 = vadd.f32 %v637, %v575
    %v639 = vadd.f32 %v638, %v576
    %v640 = vadd.f32 %v639, %v577
    %v641 = vadd.f32 %v640, %v578
    %v642 = vadd.f32 %v641, %v579
    %v643 = vadd.f32 %v642, %v580
    %v644 = vadd.f32 %v643, %v581
    %v645 = vadd.f32 %v644, %v582
    %v646 = vadd.f32 %v645, %v583
    %v647 = vadd.f32 %v646, %v584
    %v648 = vadd.f32 %v647, %v585
    %v649 = vadd.f32 %v648, %v586
    %v650 = vadd.f32 %v649, %v587
    %v651 = vadd.f32 %v650, %v588
    %v652 = vadd.f32 %v651, %v589
    %v653 = vadd.f32 %v652, %v590
    %v654 = vadd.f32 %v653, %v591
    %v655 = vadd.f32 %v654, %v592
    %v656 = vadd.f32 %v655, %v593
    %v657 = vadd.f32 %v656, %v594
    %v658 = vadd.f32 %v657, %v595
    %v659 = vadd.f32 %v658, %v596
    %v660 = vadd.f32 %v659, %v597
    %v661 = vadd.f32 %v660, %v598
    %v662 = vadd.f32 %v661, %v599
    %v663 = vadd.f32 %v662, %v600
    %v664 = vadd.f32 %v663, %v601
    %v665 = vadd.f32 %v664, %v602
    %v666 = vadd.f32 %v665, %v603
    %v667 = vadd.f32 %v666, %v604
    %v668 = vadd.f32 %v667, %v605
    %v669 = vadd.f32 %v668, %v606
    %v670 = vadd.f32 %v669, %v607
    %v671 = vadd.f32 %v670, %v608
    %v672 = vadd.f32 %v671, %v609
    %v673 = vadd.f32 %v672, %v610
    %v674 = vadd.f32 %v673, %v611
    %v675 = vadd.f32 %v674, %v612
    %v676 = vadd.f32 %v675, %v613
    %v677 = vadd.f32 %v676, %v614
    %v678 = vrot.slane %v677, 4
    %v679 = vadd.f32 %v677, %v678
    %v680 = vrot.slane %v679, 2
    %v681 = vadd.f32 %v679, %v680
    %v682 = vrot.slane %v681, 1
    %v683 = vadd.f32 %v681, %v682
    %v684 = vrcp.pop 512.0
    %v685 = vmul.f32 512.0, %v684
    %v686 = vsub.f32 1.0, %v685
    %v687 = vmul.f32 %v684, %v686
    %v688 = vadd.f32 %v684, %v687
    %vm689 = vweird.f32 %v684
    %v690 = vsel %vm689, %v684, %v688
    %v691 = vmul.f32 %v683, %v690
    %v692 = vmul.f32 %v551, %v551
    %v693 = vmul.f32 %v552, %v552
    %v694 = vmul.f32 %v553, %v553
    %v695 = vmul.f32 %v554, %v554
    %v696 = vmul.f32 %v555, %v555
    %v697 = vmul.f32 %v556, %v556
    %v698 = vmul.f32 %v557, %v557
    %v699 = vmul.f32 %v558, %v558
    %v700 = vmul.f32 %v559, %v559
    %v701 = vmul.f32 %v560, %v560
    %v702 = vmul.f32 %v561, %v561
    %v703 = vmul.f32 %v562, %v562
    %v704 = vmul.f32 %v563, %v563
    %v705 = vmul.f32 %v564, %v564
    %v706 = vmul.f32 %v565, %v565
    %v707 = vmul.f32 %v566, %v566
    %v708 = vmul.f32 %v567, %v567
    %v709 = vmul.f32 %v568, %v568
    %v710 = vmul.f32 %v569, %v569
    %v711 = vmul.f32 %v570, %v570
    %v712 = vmul.f32 %v571, %v571
    %v713 = vmul.f32 %v572, %v572
    %v714 = vmul.f32 %v573, %v573
    %v715 = vmul.f32 %v574, %v574
    %v716 = vmul.f32 %v575, %v575
    %v717 = vmul.f32 %v576, %v576
    %v718 = vmul.f32 %v577, %v577
    %v719 = vmul.f32 %v578, %v578
    %v720 = vmul.f32 %v579, %v579
    %v721 = vmul.f32 %v580, %v580
    %v722 = vmul.f32 %v581, %v581
    %v723 = vmul.f32 %v582, %v582
    %v724 = vmul.f32 %v583, %v583
    %v725 = vmul.f32 %v584, %v584
    %v726 = vmul.f32 %v585, %v585
    %v727 = vmul.f32 %v586, %v586
    %v728 = vmul.f32 %v587, %v587
    %v729 = vmul.f32 %v588, %v588
    %v730 = vmul.f32 %v589, %v589
    %v731 = vmul.f32 %v590, %v590
    %v732 = vmul.f32 %v591, %v591
    %v733 = vmul.f32 %v592, %v592
    %v734 = vmul.f32 %v593, %v593
    %v735 = vmul.f32 %v594, %v594
    %v736 = vmul.f32 %v595, %v595
    %v737 = vmul.f32 %v596, %v596
    %v738 = vmul.f32 %v597, %v597
    %v739 = vmul.f32 %v598, %v598
    %v740 = vmul.f32 %v599, %v599
    %v741 = vmul.f32 %v600, %v600
    %v742 = vmul.f32 %v601, %v601
    %v743 = vmul.f32 %v602, %v602
    %v744 = vmul.f32 %v603, %v603
    %v745 = vmul.f32 %v604, %v604
    %v746 = vmul.f32 %v605, %v605
    %v747 = vmul.f32 %v606, %v606
    %v748 = vmul.f32 %v607, %v607
    %v749 = vmul.f32 %v608, %v608
    %v750 = vmul.f32 %v609, %v609
    %v751 = vmul.f32 %v610, %v610
    %v752 = vmul.f32 %v611, %v611
    %v753 = vmul.f32 %v612, %v612
    %v754 = vmul.f32 %v613, %v613
    %v755 = vmul.f32 %v614, %v614
    %v756 = vadd.f32 %v692, %v693
    %v757 = vadd.f32 %v756, %v694
    %v758 = vadd.f32 %v757, %v695
    %v759 = vadd.f32 %v758, %v696
    %v760 = vadd.f32 %v759, %v697
    %v761 = vadd.f32 %v760, %v698
    %v762 = vadd.f32 %v761, %v699
    %v763 = vadd.f32 %v762, %v700
    %v764 = vadd.f32 %v763, %v701
    %v765 = vadd.f32 %v764, %v702
    %v766 = vadd.f32 %v765, %v703
    %v767 = vadd.f32 %v766, %v704
    %v768 = vadd.f32 %v767, %v705
    %v769 = vadd.f32 %v768, %v706
    %v770 = vadd.f32 %v769, %v707
    %v771 = vadd.f32 %v770, %v708
    %v772 = vadd.f32 %v771, %v709
    %v773 = vadd.f32 %v772, %v710
    %v774 = vadd.f32 %v773, %v711
    %v775 = vadd.f32 %v774, %v712
    %v776 = vadd.f32 %v775, %v713
    %v777 = vadd.f32 %v776, %v714
    %v778 = vadd.f32 %v777, %v715
    %v779 = vadd.f32 %v778, %v716
    %v780 = vadd.f32 %v779, %v717
    %v781 = vadd.f32 %v780, %v718
    %v782 = vadd.f32 %v781, %v719
    %v783 = vadd.f32 %v782, %v720
    %v784 = vadd.f32 %v783, %v721
    %v785 = vadd.f32 %v784, %v722
    %v786 = vadd.f32 %v785, %v723
    %v787 = vadd.f32 %v786, %v724
    %v788 = vadd.f32 %v787, %v725
    %v789 = vadd.f32 %v788, %v726
    %v790 = vadd.f32 %v789, %v727
    %v791 = vadd.f32 %v790, %v728
    %v792 = vadd.f32 %v791, %v729
    %v793 = vadd.f32 %v792, %v730
    %v794 = vadd.f32 %v793, %v731
    %v795 = vadd.f32 %v794, %v732
    %v796 = vadd.f32 %v795, %v733
    %v797 = vadd.f32 %v796, %v734
    %v798 = vadd.f32 %v797, %v735
    %v799 = vadd.f32 %v798, %v736
    %v800 = vadd.f32 %v799, %v737
    %v801 = vadd.f32 %v800, %v738
    %v802 = vadd.f32 %v801, %v739
    %v803 = vadd.f32 %v802, %v740
    %v804 = vadd.f32 %v803, %v741
    %v805 = vadd.f32 %v804, %v742
    %v806 = vadd.f32 %v805, %v743
    %v807 = vadd.f32 %v806, %v744
    %v808 = vadd.f32 %v807, %v745
    %v809 = vadd.f32 %v808, %v746
    %v810 = vadd.f32 %v809, %v747
    %v811 = vadd.f32 %v810, %v748
    %v812 = vadd.f32 %v811, %v749
    %v813 = vadd.f32 %v812, %v750
    %v814 = vadd.f32 %v813, %v751
    %v815 = vadd.f32 %v814, %v752
    %v816 = vadd.f32 %v815, %v753
    %v817 = vadd.f32 %v816, %v754
    %v818 = vadd.f32 %v817, %v755
    %v819 = vrot.slane %v818, 4
    %v820 = vadd.f32 %v818, %v819
    %v821 = vrot.slane %v820, 2
    %v822 = vadd.f32 %v820, %v821
    %v823 = vrot.slane %v822, 1
    %v824 = vadd.f32 %v822, %v823
    %v825 = vmul.f32 %v824, %v690
    %v826 = vmul.f32 %v691, %v691
    %v827 = vsub.f32 %v825, %v826
    %v828 = vmax.f32 %v827, 0.0
    %v829 = vsub.f32 %v551, %v691
    %v830 = vsub.f32 %v552, %v691
    %v831 = vsub.f32 %v553, %v691
    %v832 = vsub.f32 %v554, %v691
    %v833 = vsub.f32 %v555, %v691
    %v834 = vsub.f32 %v556, %v691
    %v835 = vsub.f32 %v557, %v691
    %v836 = vsub.f32 %v558, %v691
    %v837 = vsub.f32 %v559, %v691
    %v838 = vsub.f32 %v560, %v691
    %v839 = vsub.f32 %v561, %v691
    %v840 = vsub.f32 %v562, %v691
    %v841 = vsub.f32 %v563, %v691
    %v842 = vsub.f32 %v564, %v691
    %v843 = vsub.f32 %v565, %v691
    %v844 = vsub.f32 %v566, %v691
    %v845 = vsub.f32 %v567, %v691
    %v846 = vsub.f32 %v568, %v691
    %v847 = vsub.f32 %v569, %v691
    %v848 = vsub.f32 %v570, %v691
    %v849 = vsub.f32 %v571, %v691
    %v850 = vsub.f32 %v572, %v691
    %v851 = vsub.f32 %v573, %v691
    %v852 = vsub.f32 %v574, %v691
    %v853 = vsub.f32 %v575, %v691
    %v854 = vsub.f32 %v576, %v691
    %v855 = vsub.f32 %v577, %v691
    %v856 = vsub.f32 %v578, %v691
    %v857 = vsub.f32 %v579, %v691
    %v858 = vsub.f32 %v580, %v691
    %v859 = vsub.f32 %v581, %v691
    %v860 = vsub.f32 %v582, %v691
    %v861 = vsub.f32 %v583, %v691
    %v862 = vsub.f32 %v584, %v691
    %v863 = vsub.f32 %v585, %v691
    %v864 = vsub.f32 %v586, %v691
    %v865 = vsub.f32 %v587, %v691
    %v866 = vsub.f32 %v588, %v691
    %v867 = vsub.f32 %v589, %v691
    %v868 = vsub.f32 %v590, %v691
    %v869 = vsub.f32 %v591, %v691
    %v870 = vsub.f32 %v592, %v691
    %v871 = vsub.f32 %v593, %v691
    %v872 = vsub.f32 %v594, %v691
    %v873 = vsub.f32 %v595, %v691
    %v874 = vsub.f32 %v596, %v691
    %v875 = vsub.f32 %v597, %v691
    %v876 = vsub.f32 %v598, %v691
    %v877 = vsub.f32 %v599, %v691
    %v878 = vsub.f32 %v600, %v691
    %v879 = vsub.f32 %v601, %v691
    %v880 = vsub.f32 %v602, %v691
    %v881 = vsub.f32 %v603, %v691
    %v882 = vsub.f32 %v604, %v691
    %v883 = vsub.f32 %v605, %v691
    %v884 = vsub.f32 %v606, %v691
    %v885 = vsub.f32 %v607, %v691
    %v886 = vsub.f32 %v608, %v691
    %v887 = vsub.f32 %v609, %v691
    %v888 = vsub.f32 %v610, %v691
    %v889 = vsub.f32 %v611, %v691
    %v890 = vsub.f32 %v612, %v691
    %v891 = vsub.f32 %v613, %v691
    %v892 = vsub.f32 %v614, %v691
    %v893 = vadd.f32 %v828, 1e-05
    %v894 = vrsqrt.pop %v893
    %v895 = vmul.f32 %v894, %v893
    %v896 = vmul.f32 %v895, %v894
    %v897 = vmul.f32 0.5, %v896
    %v898 = vsub.f32 1.5, %v897
    %v899 = vmul.f32 %v894, %v898
    %vm900 = vweird.f32 %v893
    %vm901 = vweird.f32 %v894
    %vm902 = vmor %vm900, %vm901
    %v903 = vsel %vm902, %v894, %v899
    %v904 = vmul.f32 %v829, %v903
    %v905 = vmul.f32 %v830, %v903
    %v906 = vmul.f32 %v831, %v903
    %v907 = vmul.f32 %v832, %v903
    %v908 = vmul.f32 %v833, %v903
    %v909 = vmul.f32 %v834, %v903
    %v910 = vmul.f32 %v835, %v903
    %v911 = vmul.f32 %v836, %v903
    %v912 = vmul.f32 %v837, %v903
    %v913 = vmul.f32 %v838, %v903
    %v914 = vmul.f32 %v839, %v903
    %v915 = vmul.f32 %v840, %v903
    %v916 = vmul.f32 %v841, %v903
    %v917 = vmul.f32 %v842, %v903
    %v918 = vmul.f32 %v843, %v903
    %v919 = vmul.f32 %v844, %v903
    %v920 = vmul.f32 %v845, %v903
    %v921 = vmul.f32 %v846, %v903
    %v922 = vmul.f32 %v847, %v903
    %v923 = vmul.f32 %v848, %v903
    %v924 = vmul.f32 %v849, %v903
    %v925 = vmul.f32 %v850, %v903
    %v926 = vmul.f32 %v851, %v903
    %v927 = vmul.f32 %v852, %v903
    %v928 = vmul.f32 %v853, %v903
    %v929 = vmul.f32 %v854, %v903
    %v930 = vmul.f32 %v855, %v903
    %v931 = vmul.f32 %v856, %v903
    %v932 = vmul.f32 %v857, %v903
    %v933 = vmul.f32 %v858, %v903
    %v934 = vmul.f32 %v859, %v903
    %v935 = vmul.f32 %v860, %v903
    %v936 = vmul.f32 %v861, %v903
    %v937 = vmul.f32 %v862, %v903
    %v938 = vmul.f32 %v863, %v903
    %v939 = vmul.f32 %v864, %v903
    %v940 = vmul.f32 %v865, %v903
    %v941 = vmul.f32 %v866, %v903
    %v942 = vmul.f32 %v867, %v903
    %v943 = vmul.f32 %v868, %v903
    %v944 = vmul.f32 %v869, %v903
    %v945 = vmul.f32 %v870, %v903
    %v946 = vmul.f32 %v871, %v903
    %v947 = vmul.f32 %v872, %v903
    %v948 = vmul.f32 %v873, %v903
    %v949 = vmul.f32 %v874, %v903
    %v950 = vmul.f32 %v875, %v903
    %v951 = vmul.f32 %v876, %v903
    %v952 = vmul.f32 %v877, %v903
    %v953 = vmul.f32 %v878, %v903
    %v954 = vmul.f32 %v879, %v903
    %v955 = vmul.f32 %v880, %v903
    %v956 = vmul.f32 %v881, %v903
    %v957 = vmul.f32 %v882, %v903
    %v958 = vmul.f32 %v883, %v903
    %v959 = vmul.f32 %v884, %v903
    %v960 = vmul.f32 %v885, %v903
    %v961 = vmul.f32 %v886, %v903
    %v962 = vmul.f32 %v887, %v903
    %v963 = vmul.f32 %v888, %v903
    %v964 = vmul.f32 %v889, %v903
    %v965 = vmul.f32 %v890, %v903
    %v966 = vmul.f32 %v891, %v903
    %v967 = vmul.f32 %v892, %v903
    %v968 = vpack.c.bf16 %v905, %v904
    %v969 = vpack.c.bf16 %v907, %v906
    %v970 = vpack.c.bf16 %v909, %v908
    %v971 = vpack.c.bf16 %v911, %v910
    %v972 = vpack.c.bf16 %v913, %v912
    %v973 = vpack.c.bf16 %v915, %v914
    %v974 = vpack.c.bf16 %v917, %v916
    %v975 = vpack.c.bf16 %v919, %v918
    %v976 = vpack.c.bf16 %v921, %v920
    %v977 = vpack.c.bf16 %v923, %v922
    %v978 = vpack.c.bf16 %v925, %v924
    %v979 = vpack.c.bf16 %v927, %v926
    %v980 = vpack.c.bf16 %v929, %v928
    %v981 = vpack.c.bf16 %v931, %v930
    %v982 = vpack.c.bf16 %v933, %v932
    %v983 = vpack.c.bf16 %v935, %v934
    %v984 = vpack.c.bf16 %v937, %v936
    %v985 = vpack.c.bf16 %v939, %v938
    %v986 = vpack.c.bf16 %v941, %v940
    %v987 = vpack.c.bf16 %v943, %v942
    %v988 = vpack.c.bf16 %v945, %v944
    %v989 = vpack.c.bf16 %v947, %v946
    %v990 = vpack.c.bf16 %v949, %v948
    %v991 = vpack.c.bf16 %v951, %v950
    %v992 = vpack.c.bf16 %v953, %v952
    %v993 = vpack.c.bf16 %v955, %v954
    %v994 = vpack.c.bf16 %v957, %v956
    %v995 = vpack.c.bf16 %v959, %v958
    %v996 = vpack.c.bf16 %v961, %v960
    %v997 = vpack.c.bf16 %v963, %v962
    %v998 = vpack.c.bf16 %v965, %v964
    %v999 = vpack.c.bf16 %v967, %v966
    %s1000 = scalar_lea.vmem [#allocation5], 64
    %v1001 = vld [vmem:[%s1000] sm:$0xf]
    %v1002 = vld [vmem:[%s1000 + $0x4] sm:$0xf]
    %v1003 = vld [vmem:[%s1000 + $0x8] sm:$0xf]
    %v1004 = vld [vmem:[%s1000 + $0xc] sm:$0xf]
    %v1005 = vld [vmem:[%s1000 + $0x10] sm:$0xf]
    %v1006 = vld [vmem:[%s1000 + $0x14] sm:$0xf]
    %v1007 = vld [vmem:[%s1000 + $0x18] sm:$0xf]
    %v1008 = vld [vmem:[%s1000 + $0x1c] sm:$0xf]
    %v1009 = vld [vmem:[%s1000 + $0x20] sm:$0xf]
    %v1010 = vld [vmem:[%s1000 + $0x24] sm:$0xf]
    %v1011 = vld [vmem:[%s1000 + $0x28] sm:$0xf]
    %v1012 = vld [vmem:[%s1000 + $0x2c] sm:$0xf]
    %v1013 = vld [vmem:[%s1000 + $0x30] sm:$0xf]
    %v1014 = vld [vmem:[%s1000 + $0x34] sm:$0xf]
    %v1015 = vld [vmem:[%s1000 + $0x38] sm:$0xf]
    %v1016 = vld [vmem:[%s1000 + $0x3c] sm:$0xf]
    %v1017 = vperm.slane %v60, 1
    %v1034 = vunpack.c.l.b16 %v1001
    %v1035 = vunpack.c.l.b16 %v1002
    %v1036 = vunpack.c.l.b16 %v1003
    %v1037 = vunpack.c.l.b16 %v1004
    %v1038 = vunpack.c.l.b16 %v1005
    %v1039 = vunpack.c.l.b16 %v1006
    %v1040 = vunpack.c.l.b16 %v1007
    %v1041 = vunpack.c.l.b16 %v1008
    %v1042 = vunpack.c.l.b16 %v1009
    %v1043 = vunpack.c.l.b16 %v1010
    %v1044 = vunpack.c.l.b16 %v1011
    %v1045 = vunpack.c.l.b16 %v1012
    %v1046 = vunpack.c.l.b16 %v1013
    %v1047 = vunpack.c.l.b16 %v1014
    %v1048 = vunpack.c.l.b16 %v1015
    %v1049 = vunpack.c.l.b16 %v1016
    %v1050 = vpack.c.b16 %v1035, %v1034
    %v1051 = vpack.c.b16 %v1037, %v1036
    %v1052 = vpack.c.b16 %v1039, %v1038
    %v1053 = vpack.c.b16 %v1041, %v1040
    %v1054 = vpack.c.b16 %v1043, %v1042
    %v1055 = vpack.c.b16 %v1045, %v1044
    %v1056 = vpack.c.b16 %v1047, %v1046
    %v1057 = vpack.c.b16 %v1049, %v1048
    %1066 = vmatpush.bf16.msra.mxu0 %v1057
    %1067 = vmatpush.bf16.msra.mxu0 %v1056
    %1068 = vmatpush.bf16.msra.mxu0 %v1055
    %1069 = vmatpush.bf16.msra.mxu0 %v1054
    %1070 = vmatpush.bf16.msra.mxu0 %v1053
    %1071 = vmatpush.bf16.msra.mxu0 %v1052
    %1072 = vmatpush.bf16.msra.mxu0 %v1051
    %1073 = vmatpush.bf16.msra.mxu0 %v1050
    %1074 = vmatmul.bf16.gmra.mxu0 %v968
    %v1075 = vpop.f32.mrf.mxu0
    %v1076 = vadd.f32 %v1017, %v1075
    %v1077 = vpop.f32.mrf.mxu0
    %v1078 = vadd.f32 %v1017, %v1077
    %1079 = vmatmul.bf16.gmra.mxu0 %v969
    %v1080 = vpop.f32.mrf.mxu0
    %v1081 = vadd.f32 %v1017, %v1080
    %v1082 = vpop.f32.mrf.mxu0
    %v1083 = vadd.f32 %v1017, %v1082
    %1084 = vmatmul.bf16.gmra.mxu0 %v970
    %v1085 = vpop.f32.mrf.mxu0
    %v1086 = vadd.f32 %v1017, %v1085
    %v1087 = vpop.f32.mrf.mxu0
    %v1088 = vadd.f32 %v1017, %v1087
    %1089 = vmatmul.bf16.gmra.mxu0 %v971
    %v1090 = vpop.f32.mrf.mxu0
    %v1091 = vadd.f32 %v1017, %v1090
    %v1092 = vpop.f32.mrf.mxu0
    %v1093 = vadd.f32 %v1017, %v1092
    %1094 = vmatmul.bf16.gmra.mxu0 %v972
    %v1095 = vpop.f32.mrf.mxu0
    %v1096 = vadd.f32 %v1017, %v1095
    %v1097 = vpop.f32.mrf.mxu0
    %v1098 = vadd.f32 %v1017, %v1097
    %1099 = vmatmul.bf16.gmra.mxu0 %v973
    %v1100 = vpop.f32.mrf.mxu0
    %v1101 = vadd.f32 %v1017, %v1100
    %v1102 = vpop.f32.mrf.mxu0
    %v1103 = vadd.f32 %v1017, %v1102
    %1104 = vmatmul.bf16.gmra.mxu0 %v974
    %v1105 = vpop.f32.mrf.mxu0
    %v1106 = vadd.f32 %v1017, %v1105
    %v1107 = vpop.f32.mrf.mxu0
    %v1108 = vadd.f32 %v1017, %v1107
    %1109 = vmatmul.bf16.gmra.mxu0 %v975
    %v1110 = vpop.f32.mrf.mxu0
    %v1111 = vadd.f32 %v1017, %v1110
    %v1112 = vpop.f32.mrf.mxu0
    %v1113 = vadd.f32 %v1017, %v1112
    %1114 = vmatmul.bf16.gmra.mxu0 %v976
    %v1115 = vpop.f32.mrf.mxu0
    %v1116 = vadd.f32 %v1017, %v1115
    %v1117 = vpop.f32.mrf.mxu0
    %v1118 = vadd.f32 %v1017, %v1117
    %1119 = vmatmul.bf16.gmra.mxu0 %v977
    %v1120 = vpop.f32.mrf.mxu0
    %v1121 = vadd.f32 %v1017, %v1120
    %v1122 = vpop.f32.mrf.mxu0
    %v1123 = vadd.f32 %v1017, %v1122
    %1124 = vmatmul.bf16.gmra.mxu0 %v978
    %v1125 = vpop.f32.mrf.mxu0
    %v1126 = vadd.f32 %v1017, %v1125
    %v1127 = vpop.f32.mrf.mxu0
    %v1128 = vadd.f32 %v1017, %v1127
    %1129 = vmatmul.bf16.gmra.mxu0 %v979
    %v1130 = vpop.f32.mrf.mxu0
    %v1131 = vadd.f32 %v1017, %v1130
    %v1132 = vpop.f32.mrf.mxu0
    %v1133 = vadd.f32 %v1017, %v1132
    %1134 = vmatmul.bf16.gmra.mxu0 %v980
    %v1135 = vpop.f32.mrf.mxu0
    %v1136 = vadd.f32 %v1017, %v1135
    %v1137 = vpop.f32.mrf.mxu0
    %v1138 = vadd.f32 %v1017, %v1137
    %1139 = vmatmul.bf16.gmra.mxu0 %v981
    %v1140 = vpop.f32.mrf.mxu0
    %v1141 = vadd.f32 %v1017, %v1140
    %v1142 = vpop.f32.mrf.mxu0
    %v1143 = vadd.f32 %v1017, %v1142
    %1144 = vmatmul.bf16.gmra.mxu0 %v982
    %v1145 = vpop.f32.mrf.mxu0
    %v1146 = vadd.f32 %v1017, %v1145
    %v1147 = vpop.f32.mrf.mxu0
    %v1148 = vadd.f32 %v1017, %v1147
    %1149 = vmatmul.bf16.gmra.mxu0 %v983
    %v1150 = vpop.f32.mrf.mxu0
    %v1151 = vadd.f32 %v1017, %v1150
    %v1152 = vpop.f32.mrf.mxu0
    %v1153 = vadd.f32 %v1017, %v1152
    %1154 = vmatmul.bf16.gmra.mxu0 %v984
    %v1155 = vpop.f32.mrf.mxu0
    %v1156 = vadd.f32 %v1017, %v1155
    %v1157 = vpop.f32.mrf.mxu0
    %v1158 = vadd.f32 %v1017, %v1157
    %1159 = vmatmul.bf16.gmra.mxu0 %v985
    %v1160 = vpop.f32.mrf.mxu0
    %v1161 = vadd.f32 %v1017, %v1160
    %v1162 = vpop.f32.mrf.mxu0
    %v1163 = vadd.f32 %v1017, %v1162
    %1164 = vmatmul.bf16.gmra.mxu0 %v986
    %v1165 = vpop.f32.mrf.mxu0
    %v1166 = vadd.f32 %v1017, %v1165
    %v1167 = vpop.f32.mrf.mxu0
    %v1168 = vadd.f32 %v1017, %v1167
    %1169 = vmatmul.bf16.gmra.mxu0 %v987
    %v1170 = vpop.f32.mrf.mxu0
    %v1171 = vadd.f32 %v1017, %v1170
    %v1172 = vpop.f32.mrf.mxu0
    %v1173 = vadd.f32 %v1017, %v1172
    %1174 = vmatmul.bf16.gmra.mxu0 %v988
    %v1175 = vpop.f32.mrf.mxu0
    %v1176 = vadd.f32 %v1017, %v1175
    %v1177 = vpop.f32.mrf.mxu0
    %v1178 = vadd.f32 %v1017, %v1177
    %1179 = vmatmul.bf16.gmra.mxu0 %v989
    %v1180 = vpop.f32.mrf.mxu0
    %v1181 = vadd.f32 %v1017, %v1180
    %v1182 = vpop.f32.mrf.mxu0
    %v1183 = vadd.f32 %v1017, %v1182
    %1184 = vmatmul.bf16.gmra.mxu0 %v990
    %v1185 = vpop.f32.mrf.mxu0
    %v1186 = vadd.f32 %v1017, %v1185
    %v1187 = vpop.f32.mrf.mxu0
    %v1188 = vadd.f32 %v1017, %v1187
    %1189 = vmatmul.bf16.gmra.mxu0 %v991
    %v1190 = vpop.f32.mrf.mxu0
    %v1191 = vadd.f32 %v1017, %v1190
    %v1192 = vpop.f32.mrf.mxu0
    %v1193 = vadd.f32 %v1017, %v1192
    %1194 = vmatmul.bf16.gmra.mxu0 %v992
    %v1195 = vpop.f32.mrf.mxu0
    %v1196 = vadd.f32 %v1017, %v1195
    %v1197 = vpop.f32.mrf.mxu0
    %v1198 = vadd.f32 %v1017, %v1197
    %1199 = vmatmul.bf16.gmra.mxu0 %v993
    %v1200 = vpop.f32.mrf.mxu0
    %v1201 = vadd.f32 %v1017, %v1200
    %v1202 = vpop.f32.mrf.mxu0
    %v1203 = vadd.f32 %v1017, %v1202
    %1204 = vmatmul.bf16.gmra.mxu0 %v994
    %v1205 = vpop.f32.mrf.mxu0
    %v1206 = vadd.f32 %v1017, %v1205
    %v1207 = vpop.f32.mrf.mxu0
    %v1208 = vadd.f32 %v1017, %v1207
    %1209 = vmatmul.bf16.gmra.mxu0 %v995
    %v1210 = vpop.f32.mrf.mxu0
    %v1211 = vadd.f32 %v1017, %v1210
    %v1212 = vpop.f32.mrf.mxu0
    %v1213 = vadd.f32 %v1017, %v1212
    %1214 = vmatmul.bf16.gmra.mxu0 %v996
    %v1215 = vpop.f32.mrf.mxu0
    %v1216 = vadd.f32 %v1017, %v1215
    %v1217 = vpop.f32.mrf.mxu0
    %v1218 = vadd.f32 %v1017, %v1217
    %1219 = vmatmul.bf16.gmra.mxu0 %v997
    %v1220 = vpop.f32.mrf.mxu0
    %v1221 = vadd.f32 %v1017, %v1220
    %v1222 = vpop.f32.mrf.mxu0
    %v1223 = vadd.f32 %v1017, %v1222
    %1224 = vmatmul.bf16.gmra.mxu0 %v998
    %v1225 = vpop.f32.mrf.mxu0
    %v1226 = vadd.f32 %v1017, %v1225
    %v1227 = vpop.f32.mrf.mxu0
    %v1228 = vadd.f32 %v1017, %v1227
    %1229 = vmatmul.bf16.gmra.mxu0 %v999
    %v1230 = vpop.f32.mrf.mxu0
    %v1231 = vadd.f32 %v1017, %v1230
    %v1232 = vpop.f32.mrf.mxu0
    %v1233 = vadd.f32 %v1017, %v1232
    %1234 = vdwg.mxu0
    %v1235 = vmax.f32 %v1076, 0.0
    %v1236 = vmax.f32 %v1078, 0.0
    %v1237 = vmax.f32 %v1081, 0.0
    %v1238 = vmax.f32 %v1083, 0.0
    %v1239 = vmax.f32 %v1086, 0.0
    %v1240 = vmax.f32 %v1088, 0.0
    %v1241 = vmax.f32 %v1091, 0.0
    %v1242 = vmax.f32 %v1093, 0.0
    %v1243 = vmax.f32 %v1096, 0.0
    %v1244 = vmax.f32 %v1098, 0.0
    %v1245 = vmax.f32 %v1101, 0.0
    %v1246 = vmax.f32 %v1103, 0.0
    %v1247 = vmax.f32 %v1106, 0.0
    %v1248 = vmax.f32 %v1108, 0.0
    %v1249 = vmax.f32 %v1111, 0.0
    %v1250 = vmax.f32 %v1113, 0.0
    %v1251 = vmax.f32 %v1116, 0.0
    %v1252 = vmax.f32 %v1118, 0.0
    %v1253 = vmax.f32 %v1121, 0.0
    %v1254 = vmax.f32 %v1123, 0.0
    %v1255 = vmax.f32 %v1126, 0.0
    %v1256 = vmax.f32 %v1128, 0.0
    %v1257 = vmax.f32 %v1131, 0.0
    %v1258 = vmax.f32 %v1133, 0.0
    %v1259 = vmax.f32 %v1136, 0.0
    %v1260 = vmax.f32 %v1138, 0.0
    %v1261 = vmax.f32 %v1141, 0.0
    %v1262 = vmax.f32 %v1143, 0.0
    %v1263 = vmax.f32 %v1146, 0.0
    %v1264 = vmax.f32 %v1148, 0.0
    %v1265 = vmax.f32 %v1151, 0.0
    %v1266 = vmax.f32 %v1153, 0.0
    %v1267 = vmax.f32 %v1156, 0.0
    %v1268 = vmax.f32 %v1158, 0.0
    %v1269 = vmax.f32 %v1161, 0.0
    %v1270 = vmax.f32 %v1163, 0.0
    %v1271 = vmax.f32 %v1166, 0.0
    %v1272 = vmax.f32 %v1168, 0.0
    %v1273 = vmax.f32 %v1171, 0.0
    %v1274 = vmax.f32 %v1173, 0.0
    %v1275 = vmax.f32 %v1176, 0.0
    %v1276 = vmax.f32 %v1178, 0.0
    %v1277 = vmax.f32 %v1181, 0.0
    %v1278 = vmax.f32 %v1183, 0.0
    %v1279 = vmax.f32 %v1186, 0.0
    %v1280 = vmax.f32 %v1188, 0.0
    %v1281 = vmax.f32 %v1191, 0.0
    %v1282 = vmax.f32 %v1193, 0.0
    %v1283 = vmax.f32 %v1196, 0.0
    %v1284 = vmax.f32 %v1198, 0.0
    %v1285 = vmax.f32 %v1201, 0.0
    %v1286 = vmax.f32 %v1203, 0.0
    %v1287 = vmax.f32 %v1206, 0.0
    %v1288 = vmax.f32 %v1208, 0.0
    %v1289 = vmax.f32 %v1211, 0.0
    %v1290 = vmax.f32 %v1213, 0.0
    %v1291 = vmax.f32 %v1216, 0.0
    %v1292 = vmax.f32 %v1218, 0.0
    %v1293 = vmax.f32 %v1221, 0.0
    %v1294 = vmax.f32 %v1223, 0.0
    %v1295 = vmax.f32 %v1226, 0.0
    %v1296 = vmax.f32 %v1228, 0.0
    %v1297 = vmax.f32 %v1231, 0.0
    %v1298 = vmax.f32 %v1233, 0.0
    %v1299 = vadd.f32 %v1235, %v1236
    %v1300 = vadd.f32 %v1299, %v1237
    %v1301 = vadd.f32 %v1300, %v1238
    %v1302 = vadd.f32 %v1301, %v1239
    %v1303 = vadd.f32 %v1302, %v1240
    %v1304 = vadd.f32 %v1303, %v1241
    %v1305 = vadd.f32 %v1304, %v1242
    %v1306 = vadd.f32 %v1305, %v1243
    %v1307 = vadd.f32 %v1306, %v1244
    %v1308 = vadd.f32 %v1307, %v1245
    %v1309 = vadd.f32 %v1308, %v1246
    %v1310 = vadd.f32 %v1309, %v1247
    %v1311 = vadd.f32 %v1310, %v1248
    %v1312 = vadd.f32 %v1311, %v1249
    %v1313 = vadd.f32 %v1312, %v1250
    %v1314 = vadd.f32 %v1313, %v1251
    %v1315 = vadd.f32 %v1314, %v1252
    %v1316 = vadd.f32 %v1315, %v1253
    %v1317 = vadd.f32 %v1316, %v1254
    %v1318 = vadd.f32 %v1317, %v1255
    %v1319 = vadd.f32 %v1318, %v1256
    %v1320 = vadd.f32 %v1319, %v1257
    %v1321 = vadd.f32 %v1320, %v1258
    %v1322 = vadd.f32 %v1321, %v1259
    %v1323 = vadd.f32 %v1322, %v1260
    %v1324 = vadd.f32 %v1323, %v1261
    %v1325 = vadd.f32 %v1324, %v1262
    %v1326 = vadd.f32 %v1325, %v1263
    %v1327 = vadd.f32 %v1326, %v1264
    %v1328 = vadd.f32 %v1327, %v1265
    %v1329 = vadd.f32 %v1328, %v1266
    %v1330 = vadd.f32 %v1329, %v1267
    %v1331 = vadd.f32 %v1330, %v1268
    %v1332 = vadd.f32 %v1331, %v1269
    %v1333 = vadd.f32 %v1332, %v1270
    %v1334 = vadd.f32 %v1333, %v1271
    %v1335 = vadd.f32 %v1334, %v1272
    %v1336 = vadd.f32 %v1335, %v1273
    %v1337 = vadd.f32 %v1336, %v1274
    %v1338 = vadd.f32 %v1337, %v1275
    %v1339 = vadd.f32 %v1338, %v1276
    %v1340 = vadd.f32 %v1339, %v1277
    %v1341 = vadd.f32 %v1340, %v1278
    %v1342 = vadd.f32 %v1341, %v1279
    %v1343 = vadd.f32 %v1342, %v1280
    %v1344 = vadd.f32 %v1343, %v1281
    %v1345 = vadd.f32 %v1344, %v1282
    %v1346 = vadd.f32 %v1345, %v1283
    %v1347 = vadd.f32 %v1346, %v1284
    %v1348 = vadd.f32 %v1347, %v1285
    %v1349 = vadd.f32 %v1348, %v1286
    %v1350 = vadd.f32 %v1349, %v1287
    %v1351 = vadd.f32 %v1350, %v1288
    %v1352 = vadd.f32 %v1351, %v1289
    %v1353 = vadd.f32 %v1352, %v1290
    %v1354 = vadd.f32 %v1353, %v1291
    %v1355 = vadd.f32 %v1354, %v1292
    %v1356 = vadd.f32 %v1355, %v1293
    %v1357 = vadd.f32 %v1356, %v1294
    %v1358 = vadd.f32 %v1357, %v1295
    %v1359 = vadd.f32 %v1358, %v1296
    %v1360 = vadd.f32 %v1359, %v1297
    %v1361 = vadd.f32 %v1360, %v1298
    %v1362 = vrot.slane %v1361, 4
    %v1363 = vadd.f32 %v1361, %v1362
    %v1364 = vrot.slane %v1363, 2
    %v1365 = vadd.f32 %v1363, %v1364
    %v1366 = vrot.slane %v1365, 1
    %v1367 = vadd.f32 %v1365, %v1366
    %v1368 = vmul.f32 %v1367, %v690
    %v1369 = vmul.f32 %v1235, %v1235
    %v1370 = vmul.f32 %v1236, %v1236
    %v1371 = vmul.f32 %v1237, %v1237
    %v1372 = vmul.f32 %v1238, %v1238
    %v1373 = vmul.f32 %v1239, %v1239
    %v1374 = vmul.f32 %v1240, %v1240
    %v1375 = vmul.f32 %v1241, %v1241
    %v1376 = vmul.f32 %v1242, %v1242
    %v1377 = vmul.f32 %v1243, %v1243
    %v1378 = vmul.f32 %v1244, %v1244
    %v1379 = vmul.f32 %v1245, %v1245
    %v1380 = vmul.f32 %v1246, %v1246
    %v1381 = vmul.f32 %v1247, %v1247
    %v1382 = vmul.f32 %v1248, %v1248
    %v1383 = vmul.f32 %v1249, %v1249
    %v1384 = vmul.f32 %v1250, %v1250
    %v1385 = vmul.f32 %v1251, %v1251
    %v1386 = vmul.f32 %v1252, %v1252
    %v1387 = vmul.f32 %v1253, %v1253
    %v1388 = vmul.f32 %v1254, %v1254
    %v1389 = vmul.f32 %v1255, %v1255
    %v1390 = vmul.f32 %v1256, %v1256
    %v1391 = vmul.f32 %v1257, %v1257
    %v1392 = vmul.f32 %v1258, %v1258
    %v1393 = vmul.f32 %v1259, %v1259
    %v1394 = vmul.f32 %v1260, %v1260
    %v1395 = vmul.f32 %v1261, %v1261
    %v1396 = vmul.f32 %v1262, %v1262
    %v1397 = vmul.f32 %v1263, %v1263
    %v1398 = vmul.f32 %v1264, %v1264
    %v1399 = vmul.f32 %v1265, %v1265
    %v1400 = vmul.f32 %v1266, %v1266
    %v1401 = vmul.f32 %v1267, %v1267
    %v1402 = vmul.f32 %v1268, %v1268
    %v1403 = vmul.f32 %v1269, %v1269
    %v1404 = vmul.f32 %v1270, %v1270
    %v1405 = vmul.f32 %v1271, %v1271
    %v1406 = vmul.f32 %v1272, %v1272
    %v1407 = vmul.f32 %v1273, %v1273
    %v1408 = vmul.f32 %v1274, %v1274
    %v1409 = vmul.f32 %v1275, %v1275
    %v1410 = vmul.f32 %v1276, %v1276
    %v1411 = vmul.f32 %v1277, %v1277
    %v1412 = vmul.f32 %v1278, %v1278
    %v1413 = vmul.f32 %v1279, %v1279
    %v1414 = vmul.f32 %v1280, %v1280
    %v1415 = vmul.f32 %v1281, %v1281
    %v1416 = vmul.f32 %v1282, %v1282
    %v1417 = vmul.f32 %v1283, %v1283
    %v1418 = vmul.f32 %v1284, %v1284
    %v1419 = vmul.f32 %v1285, %v1285
    %v1420 = vmul.f32 %v1286, %v1286
    %v1421 = vmul.f32 %v1287, %v1287
    %v1422 = vmul.f32 %v1288, %v1288
    %v1423 = vmul.f32 %v1289, %v1289
    %v1424 = vmul.f32 %v1290, %v1290
    %v1425 = vmul.f32 %v1291, %v1291
    %v1426 = vmul.f32 %v1292, %v1292
    %v1427 = vmul.f32 %v1293, %v1293
    %v1428 = vmul.f32 %v1294, %v1294
    %v1429 = vmul.f32 %v1295, %v1295
    %v1430 = vmul.f32 %v1296, %v1296
    %v1431 = vmul.f32 %v1297, %v1297
    %v1432 = vmul.f32 %v1298, %v1298
    %v1433 = vadd.f32 %v1369, %v1370
    %v1434 = vadd.f32 %v1433, %v1371
    %v1435 = vadd.f32 %v1434, %v1372
    %v1436 = vadd.f32 %v1435, %v1373
    %v1437 = vadd.f32 %v1436, %v1374
    %v1438 = vadd.f32 %v1437, %v1375
    %v1439 = vadd.f32 %v1438, %v1376
    %v1440 = vadd.f32 %v1439, %v1377
    %v1441 = vadd.f32 %v1440, %v1378
    %v1442 = vadd.f32 %v1441, %v1379
    %v1443 = vadd.f32 %v1442, %v1380
    %v1444 = vadd.f32 %v1443, %v1381
    %v1445 = vadd.f32 %v1444, %v1382
    %v1446 = vadd.f32 %v1445, %v1383
    %v1447 = vadd.f32 %v1446, %v1384
    %v1448 = vadd.f32 %v1447, %v1385
    %v1449 = vadd.f32 %v1448, %v1386
    %v1450 = vadd.f32 %v1449, %v1387
    %v1451 = vadd.f32 %v1450, %v1388
    %v1452 = vadd.f32 %v1451, %v1389
    %v1453 = vadd.f32 %v1452, %v1390
    %v1454 = vadd.f32 %v1453, %v1391
    %v1455 = vadd.f32 %v1454, %v1392
    %v1456 = vadd.f32 %v1455, %v1393
    %v1457 = vadd.f32 %v1456, %v1394
    %v1458 = vadd.f32 %v1457, %v1395
    %v1459 = vadd.f32 %v1458, %v1396
    %v1460 = vadd.f32 %v1459, %v1397
    %v1461 = vadd.f32 %v1460, %v1398
    %v1462 = vadd.f32 %v1461, %v1399
    %v1463 = vadd.f32 %v1462, %v1400
    %v1464 = vadd.f32 %v1463, %v1401
    %v1465 = vadd.f32 %v1464, %v1402
    %v1466 = vadd.f32 %v1465, %v1403
    %v1467 = vadd.f32 %v1466, %v1404
    %v1468 = vadd.f32 %v1467, %v1405
    %v1469 = vadd.f32 %v1468, %v1406
    %v1470 = vadd.f32 %v1469, %v1407
    %v1471 = vadd.f32 %v1470, %v1408
    %v1472 = vadd.f32 %v1471, %v1409
    %v1473 = vadd.f32 %v1472, %v1410
    %v1474 = vadd.f32 %v1473, %v1411
    %v1475 = vadd.f32 %v1474, %v1412
    %v1476 = vadd.f32 %v1475, %v1413
    %v1477 = vadd.f32 %v1476, %v1414
    %v1478 = vadd.f32 %v1477, %v1415
    %v1479 = vadd.f32 %v1478, %v1416
    %v1480 = vadd.f32 %v1479, %v1417
    %v1481 = vadd.f32 %v1480, %v1418
    %v1482 = vadd.f32 %v1481, %v1419
    %v1483 = vadd.f32 %v1482, %v1420
    %v1484 = vadd.f32 %v1483, %v1421
    %v1485 = vadd.f32 %v1484, %v1422
    %v1486 = vadd.f32 %v1485, %v1423
    %v1487 = vadd.f32 %v1486, %v1424
    %v1488 = vadd.f32 %v1487, %v1425
    %v1489 = vadd.f32 %v1488, %v1426
    %v1490 = vadd.f32 %v1489, %v1427
    %v1491 = vadd.f32 %v1490, %v1428
    %v1492 = vadd.f32 %v1491, %v1429
    %v1493 = vadd.f32 %v1492, %v1430
    %v1494 = vadd.f32 %v1493, %v1431
    %v1495 = vadd.f32 %v1494, %v1432
    %v1496 = vrot.slane %v1495, 4
    %v1497 = vadd.f32 %v1495, %v1496
    %v1498 = vrot.slane %v1497, 2
    %v1499 = vadd.f32 %v1497, %v1498
    %v1500 = vrot.slane %v1499, 1
    %v1501 = vadd.f32 %v1499, %v1500
    %v1502 = vmul.f32 %v1501, %v690
    %v1503 = vmul.f32 %v1368, %v1368
    %v1504 = vsub.f32 %v1502, %v1503
    %v1505 = vmax.f32 %v1504, 0.0
    %v1506 = vsub.f32 %v1235, %v1368
    %v1507 = vsub.f32 %v1236, %v1368
    %v1508 = vsub.f32 %v1237, %v1368
    %v1509 = vsub.f32 %v1238, %v1368
    %v1510 = vsub.f32 %v1239, %v1368
    %v1511 = vsub.f32 %v1240, %v1368
    %v1512 = vsub.f32 %v1241, %v1368
    %v1513 = vsub.f32 %v1242, %v1368
    %v1514 = vsub.f32 %v1243, %v1368
    %v1515 = vsub.f32 %v1244, %v1368
    %v1516 = vsub.f32 %v1245, %v1368
    %v1517 = vsub.f32 %v1246, %v1368
    %v1518 = vsub.f32 %v1247, %v1368
    %v1519 = vsub.f32 %v1248, %v1368
    %v1520 = vsub.f32 %v1249, %v1368
    %v1521 = vsub.f32 %v1250, %v1368
    %v1522 = vsub.f32 %v1251, %v1368
    %v1523 = vsub.f32 %v1252, %v1368
    %v1524 = vsub.f32 %v1253, %v1368
    %v1525 = vsub.f32 %v1254, %v1368
    %v1526 = vsub.f32 %v1255, %v1368
    %v1527 = vsub.f32 %v1256, %v1368
    %v1528 = vsub.f32 %v1257, %v1368
    %v1529 = vsub.f32 %v1258, %v1368
    %v1530 = vsub.f32 %v1259, %v1368
    %v1531 = vsub.f32 %v1260, %v1368
    %v1532 = vsub.f32 %v1261, %v1368
    %v1533 = vsub.f32 %v1262, %v1368
    %v1534 = vsub.f32 %v1263, %v1368
    %v1535 = vsub.f32 %v1264, %v1368
    %v1536 = vsub.f32 %v1265, %v1368
    %v1537 = vsub.f32 %v1266, %v1368
    %v1538 = vsub.f32 %v1267, %v1368
    %v1539 = vsub.f32 %v1268, %v1368
    %v1540 = vsub.f32 %v1269, %v1368
    %v1541 = vsub.f32 %v1270, %v1368
    %v1542 = vsub.f32 %v1271, %v1368
    %v1543 = vsub.f32 %v1272, %v1368
    %v1544 = vsub.f32 %v1273, %v1368
    %v1545 = vsub.f32 %v1274, %v1368
    %v1546 = vsub.f32 %v1275, %v1368
    %v1547 = vsub.f32 %v1276, %v1368
    %v1548 = vsub.f32 %v1277, %v1368
    %v1549 = vsub.f32 %v1278, %v1368
    %v1550 = vsub.f32 %v1279, %v1368
    %v1551 = vsub.f32 %v1280, %v1368
    %v1552 = vsub.f32 %v1281, %v1368
    %v1553 = vsub.f32 %v1282, %v1368
    %v1554 = vsub.f32 %v1283, %v1368
    %v1555 = vsub.f32 %v1284, %v1368
    %v1556 = vsub.f32 %v1285, %v1368
    %v1557 = vsub.f32 %v1286, %v1368
    %v1558 = vsub.f32 %v1287, %v1368
    %v1559 = vsub.f32 %v1288, %v1368
    %v1560 = vsub.f32 %v1289, %v1368
    %v1561 = vsub.f32 %v1290, %v1368
    %v1562 = vsub.f32 %v1291, %v1368
    %v1563 = vsub.f32 %v1292, %v1368
    %v1564 = vsub.f32 %v1293, %v1368
    %v1565 = vsub.f32 %v1294, %v1368
    %v1566 = vsub.f32 %v1295, %v1368
    %v1567 = vsub.f32 %v1296, %v1368
    %v1568 = vsub.f32 %v1297, %v1368
    %v1569 = vsub.f32 %v1298, %v1368
    %v1570 = vadd.f32 %v1505, 1e-05
    %v1571 = vrsqrt.pop %v1570
    %v1572 = vmul.f32 %v1571, %v1570
    %v1573 = vmul.f32 %v1572, %v1571
    %v1574 = vmul.f32 0.5, %v1573
    %v1575 = vsub.f32 1.5, %v1574
    %v1576 = vmul.f32 %v1571, %v1575
    %vm1577 = vweird.f32 %v1570
    %vm1578 = vweird.f32 %v1571
    %vm1579 = vmor %vm1577, %vm1578
    %v1580 = vsel %vm1579, %v1571, %v1576
    %v1581 = vmul.f32 %v1506, %v1580
    %v1582 = vmul.f32 %v1507, %v1580
    %v1583 = vmul.f32 %v1508, %v1580
    %v1584 = vmul.f32 %v1509, %v1580
    %v1585 = vmul.f32 %v1510, %v1580
    %v1586 = vmul.f32 %v1511, %v1580
    %v1587 = vmul.f32 %v1512, %v1580
    %v1588 = vmul.f32 %v1513, %v1580
    %v1589 = vmul.f32 %v1514, %v1580
    %v1590 = vmul.f32 %v1515, %v1580
    %v1591 = vmul.f32 %v1516, %v1580
    %v1592 = vmul.f32 %v1517, %v1580
    %v1593 = vmul.f32 %v1518, %v1580
    %v1594 = vmul.f32 %v1519, %v1580
    %v1595 = vmul.f32 %v1520, %v1580
    %v1596 = vmul.f32 %v1521, %v1580
    %v1597 = vmul.f32 %v1522, %v1580
    %v1598 = vmul.f32 %v1523, %v1580
    %v1599 = vmul.f32 %v1524, %v1580
    %v1600 = vmul.f32 %v1525, %v1580
    %v1601 = vmul.f32 %v1526, %v1580
    %v1602 = vmul.f32 %v1527, %v1580
    %v1603 = vmul.f32 %v1528, %v1580
    %v1604 = vmul.f32 %v1529, %v1580
    %v1605 = vmul.f32 %v1530, %v1580
    %v1606 = vmul.f32 %v1531, %v1580
    %v1607 = vmul.f32 %v1532, %v1580
    %v1608 = vmul.f32 %v1533, %v1580
    %v1609 = vmul.f32 %v1534, %v1580
    %v1610 = vmul.f32 %v1535, %v1580
    %v1611 = vmul.f32 %v1536, %v1580
    %v1612 = vmul.f32 %v1537, %v1580
    %v1613 = vmul.f32 %v1538, %v1580
    %v1614 = vmul.f32 %v1539, %v1580
    %v1615 = vmul.f32 %v1540, %v1580
    %v1616 = vmul.f32 %v1541, %v1580
    %v1617 = vmul.f32 %v1542, %v1580
    %v1618 = vmul.f32 %v1543, %v1580
    %v1619 = vmul.f32 %v1544, %v1580
    %v1620 = vmul.f32 %v1545, %v1580
    %v1621 = vmul.f32 %v1546, %v1580
    %v1622 = vmul.f32 %v1547, %v1580
    %v1623 = vmul.f32 %v1548, %v1580
    %v1624 = vmul.f32 %v1549, %v1580
    %v1625 = vmul.f32 %v1550, %v1580
    %v1626 = vmul.f32 %v1551, %v1580
    %v1627 = vmul.f32 %v1552, %v1580
    %v1628 = vmul.f32 %v1553, %v1580
    %v1629 = vmul.f32 %v1554, %v1580
    %v1630 = vmul.f32 %v1555, %v1580
    %v1631 = vmul.f32 %v1556, %v1580
    %v1632 = vmul.f32 %v1557, %v1580
    %v1633 = vmul.f32 %v1558, %v1580
    %v1634 = vmul.f32 %v1559, %v1580
    %v1635 = vmul.f32 %v1560, %v1580
    %v1636 = vmul.f32 %v1561, %v1580
    %v1637 = vmul.f32 %v1562, %v1580
    %v1638 = vmul.f32 %v1563, %v1580
    %v1639 = vmul.f32 %v1564, %v1580
    %v1640 = vmul.f32 %v1565, %v1580
    %v1641 = vmul.f32 %v1566, %v1580
    %v1642 = vmul.f32 %v1567, %v1580
    %v1643 = vmul.f32 %v1568, %v1580
    %v1644 = vmul.f32 %v1569, %v1580
    %v1645 = vpack.c.bf16 %v1582, %v1581
    %v1646 = vpack.c.bf16 %v1584, %v1583
    %v1647 = vpack.c.bf16 %v1586, %v1585
    %v1648 = vpack.c.bf16 %v1588, %v1587
    %v1649 = vpack.c.bf16 %v1590, %v1589
    %v1650 = vpack.c.bf16 %v1592, %v1591
    %v1651 = vpack.c.bf16 %v1594, %v1593
    %v1652 = vpack.c.bf16 %v1596, %v1595
    %v1653 = vpack.c.bf16 %v1598, %v1597
    %v1654 = vpack.c.bf16 %v1600, %v1599
    %v1655 = vpack.c.bf16 %v1602, %v1601
    %v1656 = vpack.c.bf16 %v1604, %v1603
    %v1657 = vpack.c.bf16 %v1606, %v1605
    %v1658 = vpack.c.bf16 %v1608, %v1607
    %v1659 = vpack.c.bf16 %v1610, %v1609
    %v1660 = vpack.c.bf16 %v1612, %v1611
    %v1661 = vpack.c.bf16 %v1614, %v1613
    %v1662 = vpack.c.bf16 %v1616, %v1615
    %v1663 = vpack.c.bf16 %v1618, %v1617
    %v1664 = vpack.c.bf16 %v1620, %v1619
    %v1665 = vpack.c.bf16 %v1622, %v1621
    %v1666 = vpack.c.bf16 %v1624, %v1623
    %v1667 = vpack.c.bf16 %v1626, %v1625
    %v1668 = vpack.c.bf16 %v1628, %v1627
    %v1669 = vpack.c.bf16 %v1630, %v1629
    %v1670 = vpack.c.bf16 %v1632, %v1631
    %v1671 = vpack.c.bf16 %v1634, %v1633
    %v1672 = vpack.c.bf16 %v1636, %v1635
    %v1673 = vpack.c.bf16 %v1638, %v1637
    %v1674 = vpack.c.bf16 %v1640, %v1639
    %v1675 = vpack.c.bf16 %v1642, %v1641
    %v1676 = vpack.c.bf16 %v1644, %v1643
    %s1677 = scalar_lea.vmem [#allocation5], 128
    %v1678 = vld [vmem:[%s1677] sm:$0xf]
    %v1679 = vld [vmem:[%s1677 + $0x4] sm:$0xf]
    %v1680 = vld [vmem:[%s1677 + $0x8] sm:$0xf]
    %v1681 = vld [vmem:[%s1677 + $0xc] sm:$0xf]
    %v1682 = vld [vmem:[%s1677 + $0x10] sm:$0xf]
    %v1683 = vld [vmem:[%s1677 + $0x14] sm:$0xf]
    %v1684 = vld [vmem:[%s1677 + $0x18] sm:$0xf]
    %v1685 = vld [vmem:[%s1677 + $0x1c] sm:$0xf]
    %v1686 = vld [vmem:[%s1677 + $0x20] sm:$0xf]
    %v1687 = vld [vmem:[%s1677 + $0x24] sm:$0xf]
    %v1688 = vld [vmem:[%s1677 + $0x28] sm:$0xf]
    %v1689 = vld [vmem:[%s1677 + $0x2c] sm:$0xf]
    %v1690 = vld [vmem:[%s1677 + $0x30] sm:$0xf]
    %v1691 = vld [vmem:[%s1677 + $0x34] sm:$0xf]
    %v1692 = vld [vmem:[%s1677 + $0x38] sm:$0xf]
    %v1693 = vld [vmem:[%s1677 + $0x3c] sm:$0xf]
    %v1694 = vperm.slane %v60, 2
    %v1711 = vunpack.c.l.b16 %v1678
    %v1712 = vunpack.c.l.b16 %v1679
    %v1713 = vunpack.c.l.b16 %v1680
    %v1714 = vunpack.c.l.b16 %v1681
    %v1715 = vunpack.c.l.b16 %v1682
    %v1716 = vunpack.c.l.b16 %v1683
    %v1717 = vunpack.c.l.b16 %v1684
    %v1718 = vunpack.c.l.b16 %v1685
    %v1719 = vunpack.c.l.b16 %v1686
    %v1720 = vunpack.c.l.b16 %v1687
    %v1721 = vunpack.c.l.b16 %v1688
    %v1722 = vunpack.c.l.b16 %v1689
    %v1723 = vunpack.c.l.b16 %v1690
    %v1724 = vunpack.c.l.b16 %v1691
    %v1725 = vunpack.c.l.b16 %v1692
    %v1726 = vunpack.c.l.b16 %v1693
    %v1727 = vpack.c.b16 %v1712, %v1711
    %v1728 = vpack.c.b16 %v1714, %v1713
    %v1729 = vpack.c.b16 %v1716, %v1715
    %v1730 = vpack.c.b16 %v1718, %v1717
    %v1731 = vpack.c.b16 %v1720, %v1719
    %v1732 = vpack.c.b16 %v1722, %v1721
    %v1733 = vpack.c.b16 %v1724, %v1723
    %v1734 = vpack.c.b16 %v1726, %v1725
    %1743 = vmatpush.bf16.msra.mxu0 %v1734
    %1744 = vmatpush.bf16.msra.mxu0 %v1733
    %1745 = vmatpush.bf16.msra.mxu0 %v1732
    %1746 = vmatpush.bf16.msra.mxu0 %v1731
    %1747 = vmatpush.bf16.msra.mxu0 %v1730
    %1748 = vmatpush.bf16.msra.mxu0 %v1729
    %1749 = vmatpush.bf16.msra.mxu0 %v1728
    %1750 = vmatpush.bf16.msra.mxu0 %v1727
    %1751 = vmatmul.bf16.gmra.mxu0 %v1645
    %v1752 = vpop.f32.mrf.mxu0
    %v1753 = vadd.f32 %v1694, %v1752
    %v1754 = vpop.f32.mrf.mxu0
    %v1755 = vadd.f32 %v1694, %v1754
    %1756 = vmatmul.bf16.gmra.mxu0 %v1646
    %v1757 = vpop.f32.mrf.mxu0
    %v1758 = vadd.f32 %v1694, %v1757
    %v1759 = vpop.f32.mrf.mxu0
    %v1760 = vadd.f32 %v1694, %v1759
    %1761 = vmatmul.bf16.gmra.mxu0 %v1647
    %v1762 = vpop.f32.mrf.mxu0
    %v1763 = vadd.f32 %v1694, %v1762
    %v1764 = vpop.f32.mrf.mxu0
    %v1765 = vadd.f32 %v1694, %v1764
    %1766 = vmatmul.bf16.gmra.mxu0 %v1648
    %v1767 = vpop.f32.mrf.mxu0
    %v1768 = vadd.f32 %v1694, %v1767
    %v1769 = vpop.f32.mrf.mxu0
    %v1770 = vadd.f32 %v1694, %v1769
    %1771 = vmatmul.bf16.gmra.mxu0 %v1649
    %v1772 = vpop.f32.mrf.mxu0
    %v1773 = vadd.f32 %v1694, %v1772
    %v1774 = vpop.f32.mrf.mxu0
    %v1775 = vadd.f32 %v1694, %v1774
    %1776 = vmatmul.bf16.gmra.mxu0 %v1650
    %v1777 = vpop.f32.mrf.mxu0
    %v1778 = vadd.f32 %v1694, %v1777
    %v1779 = vpop.f32.mrf.mxu0
    %v1780 = vadd.f32 %v1694, %v1779
    %1781 = vmatmul.bf16.gmra.mxu0 %v1651
    %v1782 = vpop.f32.mrf.mxu0
    %v1783 = vadd.f32 %v1694, %v1782
    %v1784 = vpop.f32.mrf.mxu0
    %v1785 = vadd.f32 %v1694, %v1784
    %1786 = vmatmul.bf16.gmra.mxu0 %v1652
    %v1787 = vpop.f32.mrf.mxu0
    %v1788 = vadd.f32 %v1694, %v1787
    %v1789 = vpop.f32.mrf.mxu0
    %v1790 = vadd.f32 %v1694, %v1789
    %1791 = vmatmul.bf16.gmra.mxu0 %v1653
    %v1792 = vpop.f32.mrf.mxu0
    %v1793 = vadd.f32 %v1694, %v1792
    %v1794 = vpop.f32.mrf.mxu0
    %v1795 = vadd.f32 %v1694, %v1794
    %1796 = vmatmul.bf16.gmra.mxu0 %v1654
    %v1797 = vpop.f32.mrf.mxu0
    %v1798 = vadd.f32 %v1694, %v1797
    %v1799 = vpop.f32.mrf.mxu0
    %v1800 = vadd.f32 %v1694, %v1799
    %1801 = vmatmul.bf16.gmra.mxu0 %v1655
    %v1802 = vpop.f32.mrf.mxu0
    %v1803 = vadd.f32 %v1694, %v1802
    %v1804 = vpop.f32.mrf.mxu0
    %v1805 = vadd.f32 %v1694, %v1804
    %1806 = vmatmul.bf16.gmra.mxu0 %v1656
    %v1807 = vpop.f32.mrf.mxu0
    %v1808 = vadd.f32 %v1694, %v1807
    %v1809 = vpop.f32.mrf.mxu0
    %v1810 = vadd.f32 %v1694, %v1809
    %1811 = vmatmul.bf16.gmra.mxu0 %v1657
    %v1812 = vpop.f32.mrf.mxu0
    %v1813 = vadd.f32 %v1694, %v1812
    %v1814 = vpop.f32.mrf.mxu0
    %v1815 = vadd.f32 %v1694, %v1814
    %1816 = vmatmul.bf16.gmra.mxu0 %v1658
    %v1817 = vpop.f32.mrf.mxu0
    %v1818 = vadd.f32 %v1694, %v1817
    %v1819 = vpop.f32.mrf.mxu0
    %v1820 = vadd.f32 %v1694, %v1819
    %1821 = vmatmul.bf16.gmra.mxu0 %v1659
    %v1822 = vpop.f32.mrf.mxu0
    %v1823 = vadd.f32 %v1694, %v1822
    %v1824 = vpop.f32.mrf.mxu0
    %v1825 = vadd.f32 %v1694, %v1824
    %1826 = vmatmul.bf16.gmra.mxu0 %v1660
    %v1827 = vpop.f32.mrf.mxu0
    %v1828 = vadd.f32 %v1694, %v1827
    %v1829 = vpop.f32.mrf.mxu0
    %v1830 = vadd.f32 %v1694, %v1829
    %1831 = vmatmul.bf16.gmra.mxu0 %v1661
    %v1832 = vpop.f32.mrf.mxu0
    %v1833 = vadd.f32 %v1694, %v1832
    %v1834 = vpop.f32.mrf.mxu0
    %v1835 = vadd.f32 %v1694, %v1834
    %1836 = vmatmul.bf16.gmra.mxu0 %v1662
    %v1837 = vpop.f32.mrf.mxu0
    %v1838 = vadd.f32 %v1694, %v1837
    %v1839 = vpop.f32.mrf.mxu0
    %v1840 = vadd.f32 %v1694, %v1839
    %1841 = vmatmul.bf16.gmra.mxu0 %v1663
    %v1842 = vpop.f32.mrf.mxu0
    %v1843 = vadd.f32 %v1694, %v1842
    %v1844 = vpop.f32.mrf.mxu0
    %v1845 = vadd.f32 %v1694, %v1844
    %1846 = vmatmul.bf16.gmra.mxu0 %v1664
    %v1847 = vpop.f32.mrf.mxu0
    %v1848 = vadd.f32 %v1694, %v1847
    %v1849 = vpop.f32.mrf.mxu0
    %v1850 = vadd.f32 %v1694, %v1849
    %1851 = vmatmul.bf16.gmra.mxu0 %v1665
    %v1852 = vpop.f32.mrf.mxu0
    %v1853 = vadd.f32 %v1694, %v1852
    %v1854 = vpop.f32.mrf.mxu0
    %v1855 = vadd.f32 %v1694, %v1854
    %1856 = vmatmul.bf16.gmra.mxu0 %v1666
    %v1857 = vpop.f32.mrf.mxu0
    %v1858 = vadd.f32 %v1694, %v1857
    %v1859 = vpop.f32.mrf.mxu0
    %v1860 = vadd.f32 %v1694, %v1859
    %1861 = vmatmul.bf16.gmra.mxu0 %v1667
    %v1862 = vpop.f32.mrf.mxu0
    %v1863 = vadd.f32 %v1694, %v1862
    %v1864 = vpop.f32.mrf.mxu0
    %v1865 = vadd.f32 %v1694, %v1864
    %1866 = vmatmul.bf16.gmra.mxu0 %v1668
    %v1867 = vpop.f32.mrf.mxu0
    %v1868 = vadd.f32 %v1694, %v1867
    %v1869 = vpop.f32.mrf.mxu0
    %v1870 = vadd.f32 %v1694, %v1869
    %1871 = vmatmul.bf16.gmra.mxu0 %v1669
    %v1872 = vpop.f32.mrf.mxu0
    %v1873 = vadd.f32 %v1694, %v1872
    %v1874 = vpop.f32.mrf.mxu0
    %v1875 = vadd.f32 %v1694, %v1874
    %1876 = vmatmul.bf16.gmra.mxu0 %v1670
    %v1877 = vpop.f32.mrf.mxu0
    %v1878 = vadd.f32 %v1694, %v1877
    %v1879 = vpop.f32.mrf.mxu0
    %v1880 = vadd.f32 %v1694, %v1879
    %1881 = vmatmul.bf16.gmra.mxu0 %v1671
    %v1882 = vpop.f32.mrf.mxu0
    %v1883 = vadd.f32 %v1694, %v1882
    %v1884 = vpop.f32.mrf.mxu0
    %v1885 = vadd.f32 %v1694, %v1884
    %1886 = vmatmul.bf16.gmra.mxu0 %v1672
    %v1887 = vpop.f32.mrf.mxu0
    %v1888 = vadd.f32 %v1694, %v1887
    %v1889 = vpop.f32.mrf.mxu0
    %v1890 = vadd.f32 %v1694, %v1889
    %1891 = vmatmul.bf16.gmra.mxu0 %v1673
    %v1892 = vpop.f32.mrf.mxu0
    %v1893 = vadd.f32 %v1694, %v1892
    %v1894 = vpop.f32.mrf.mxu0
    %v1895 = vadd.f32 %v1694, %v1894
    %1896 = vmatmul.bf16.gmra.mxu0 %v1674
    %v1897 = vpop.f32.mrf.mxu0
    %v1898 = vadd.f32 %v1694, %v1897
    %v1899 = vpop.f32.mrf.mxu0
    %v1900 = vadd.f32 %v1694, %v1899
    %1901 = vmatmul.bf16.gmra.mxu0 %v1675
    %v1902 = vpop.f32.mrf.mxu0
    %v1903 = vadd.f32 %v1694, %v1902
    %v1904 = vpop.f32.mrf.mxu0
    %v1905 = vadd.f32 %v1694, %v1904
    %1906 = vmatmul.bf16.gmra.mxu0 %v1676
    %v1907 = vpop.f32.mrf.mxu0
    %v1908 = vadd.f32 %v1694, %v1907
    %v1909 = vpop.f32.mrf.mxu0
    %v1910 = vadd.f32 %v1694, %v1909
    %1911 = vdwg.mxu0
    %v1912 = vmax.f32 %v1753, 0.0
    %v1913 = vmax.f32 %v1755, 0.0
    %v1914 = vmax.f32 %v1758, 0.0
    %v1915 = vmax.f32 %v1760, 0.0
    %v1916 = vmax.f32 %v1763, 0.0
    %v1917 = vmax.f32 %v1765, 0.0
    %v1918 = vmax.f32 %v1768, 0.0
    %v1919 = vmax.f32 %v1770, 0.0
    %v1920 = vmax.f32 %v1773, 0.0
    %v1921 = vmax.f32 %v1775, 0.0
    %v1922 = vmax.f32 %v1778, 0.0
    %v1923 = vmax.f32 %v1780, 0.0
    %v1924 = vmax.f32 %v1783, 0.0
    %v1925 = vmax.f32 %v1785, 0.0
    %v1926 = vmax.f32 %v1788, 0.0
    %v1927 = vmax.f32 %v1790, 0.0
    %v1928 = vmax.f32 %v1793, 0.0
    %v1929 = vmax.f32 %v1795, 0.0
    %v1930 = vmax.f32 %v1798, 0.0
    %v1931 = vmax.f32 %v1800, 0.0
    %v1932 = vmax.f32 %v1803, 0.0
    %v1933 = vmax.f32 %v1805, 0.0
    %v1934 = vmax.f32 %v1808, 0.0
    %v1935 = vmax.f32 %v1810, 0.0
    %v1936 = vmax.f32 %v1813, 0.0
    %v1937 = vmax.f32 %v1815, 0.0
    %v1938 = vmax.f32 %v1818, 0.0
    %v1939 = vmax.f32 %v1820, 0.0
    %v1940 = vmax.f32 %v1823, 0.0
    %v1941 = vmax.f32 %v1825, 0.0
    %v1942 = vmax.f32 %v1828, 0.0
    %v1943 = vmax.f32 %v1830, 0.0
    %v1944 = vmax.f32 %v1833, 0.0
    %v1945 = vmax.f32 %v1835, 0.0
    %v1946 = vmax.f32 %v1838, 0.0
    %v1947 = vmax.f32 %v1840, 0.0
    %v1948 = vmax.f32 %v1843, 0.0
    %v1949 = vmax.f32 %v1845, 0.0
    %v1950 = vmax.f32 %v1848, 0.0
    %v1951 = vmax.f32 %v1850, 0.0
    %v1952 = vmax.f32 %v1853, 0.0
    %v1953 = vmax.f32 %v1855, 0.0
    %v1954 = vmax.f32 %v1858, 0.0
    %v1955 = vmax.f32 %v1860, 0.0
    %v1956 = vmax.f32 %v1863, 0.0
    %v1957 = vmax.f32 %v1865, 0.0
    %v1958 = vmax.f32 %v1868, 0.0
    %v1959 = vmax.f32 %v1870, 0.0
    %v1960 = vmax.f32 %v1873, 0.0
    %v1961 = vmax.f32 %v1875, 0.0
    %v1962 = vmax.f32 %v1878, 0.0
    %v1963 = vmax.f32 %v1880, 0.0
    %v1964 = vmax.f32 %v1883, 0.0
    %v1965 = vmax.f32 %v1885, 0.0
    %v1966 = vmax.f32 %v1888, 0.0
    %v1967 = vmax.f32 %v1890, 0.0
    %v1968 = vmax.f32 %v1893, 0.0
    %v1969 = vmax.f32 %v1895, 0.0
    %v1970 = vmax.f32 %v1898, 0.0
    %v1971 = vmax.f32 %v1900, 0.0
    %v1972 = vmax.f32 %v1903, 0.0
    %v1973 = vmax.f32 %v1905, 0.0
    %v1974 = vmax.f32 %v1908, 0.0
    %v1975 = vmax.f32 %v1910, 0.0
    %v1976 = vadd.f32 %v1912, %v1913
    %v1977 = vadd.f32 %v1976, %v1914
    %v1978 = vadd.f32 %v1977, %v1915
    %v1979 = vadd.f32 %v1978, %v1916
    %v1980 = vadd.f32 %v1979, %v1917
    %v1981 = vadd.f32 %v1980, %v1918
    %v1982 = vadd.f32 %v1981, %v1919
    %v1983 = vadd.f32 %v1982, %v1920
    %v1984 = vadd.f32 %v1983, %v1921
    %v1985 = vadd.f32 %v1984, %v1922
    %v1986 = vadd.f32 %v1985, %v1923
    %v1987 = vadd.f32 %v1986, %v1924
    %v1988 = vadd.f32 %v1987, %v1925
    %v1989 = vadd.f32 %v1988, %v1926
    %v1990 = vadd.f32 %v1989, %v1927
    %v1991 = vadd.f32 %v1990, %v1928
    %v1992 = vadd.f32 %v1991, %v1929
    %v1993 = vadd.f32 %v1992, %v1930
    %v1994 = vadd.f32 %v1993, %v1931
    %v1995 = vadd.f32 %v1994, %v1932
    %v1996 = vadd.f32 %v1995, %v1933
    %v1997 = vadd.f32 %v1996, %v1934
    %v1998 = vadd.f32 %v1997, %v1935
    %v1999 = vadd.f32 %v1998, %v1936
    %v2000 = vadd.f32 %v1999, %v1937
    %v2001 = vadd.f32 %v2000, %v1938
    %v2002 = vadd.f32 %v2001, %v1939
    %v2003 = vadd.f32 %v2002, %v1940
    %v2004 = vadd.f32 %v2003, %v1941
    %v2005 = vadd.f32 %v2004, %v1942
    %v2006 = vadd.f32 %v2005, %v1943
    %v2007 = vadd.f32 %v2006, %v1944
    %v2008 = vadd.f32 %v2007, %v1945
    %v2009 = vadd.f32 %v2008, %v1946
    %v2010 = vadd.f32 %v2009, %v1947
    %v2011 = vadd.f32 %v2010, %v1948
    %v2012 = vadd.f32 %v2011, %v1949
    %v2013 = vadd.f32 %v2012, %v1950
    %v2014 = vadd.f32 %v2013, %v1951
    %v2015 = vadd.f32 %v2014, %v1952
    %v2016 = vadd.f32 %v2015, %v1953
    %v2017 = vadd.f32 %v2016, %v1954
    %v2018 = vadd.f32 %v2017, %v1955
    %v2019 = vadd.f32 %v2018, %v1956
    %v2020 = vadd.f32 %v2019, %v1957
    %v2021 = vadd.f32 %v2020, %v1958
    %v2022 = vadd.f32 %v2021, %v1959
    %v2023 = vadd.f32 %v2022, %v1960
    %v2024 = vadd.f32 %v2023, %v1961
    %v2025 = vadd.f32 %v2024, %v1962
    %v2026 = vadd.f32 %v2025, %v1963
    %v2027 = vadd.f32 %v2026, %v1964
    %v2028 = vadd.f32 %v2027, %v1965
    %v2029 = vadd.f32 %v2028, %v1966
    %v2030 = vadd.f32 %v2029, %v1967
    %v2031 = vadd.f32 %v2030, %v1968
    %v2032 = vadd.f32 %v2031, %v1969
    %v2033 = vadd.f32 %v2032, %v1970
    %v2034 = vadd.f32 %v2033, %v1971
    %v2035 = vadd.f32 %v2034, %v1972
    %v2036 = vadd.f32 %v2035, %v1973
    %v2037 = vadd.f32 %v2036, %v1974
    %v2038 = vadd.f32 %v2037, %v1975
    %v2039 = vrot.slane %v2038, 4
    %v2040 = vadd.f32 %v2038, %v2039
    %v2041 = vrot.slane %v2040, 2
    %v2042 = vadd.f32 %v2040, %v2041
    %v2043 = vrot.slane %v2042, 1
    %v2044 = vadd.f32 %v2042, %v2043
    %v2045 = vmul.f32 %v2044, %v690
    %v2046 = vmul.f32 %v1912, %v1912
    %v2047 = vmul.f32 %v1913, %v1913
    %v2048 = vmul.f32 %v1914, %v1914
    %v2049 = vmul.f32 %v1915, %v1915
    %v2050 = vmul.f32 %v1916, %v1916
    %v2051 = vmul.f32 %v1917, %v1917
    %v2052 = vmul.f32 %v1918, %v1918
    %v2053 = vmul.f32 %v1919, %v1919
    %v2054 = vmul.f32 %v1920, %v1920
    %v2055 = vmul.f32 %v1921, %v1921
    %v2056 = vmul.f32 %v1922, %v1922
    %v2057 = vmul.f32 %v1923, %v1923
    %v2058 = vmul.f32 %v1924, %v1924
    %v2059 = vmul.f32 %v1925, %v1925
    %v2060 = vmul.f32 %v1926, %v1926
    %v2061 = vmul.f32 %v1927, %v1927
    %v2062 = vmul.f32 %v1928, %v1928
    %v2063 = vmul.f32 %v1929, %v1929
    %v2064 = vmul.f32 %v1930, %v1930
    %v2065 = vmul.f32 %v1931, %v1931
    %v2066 = vmul.f32 %v1932, %v1932
    %v2067 = vmul.f32 %v1933, %v1933
    %v2068 = vmul.f32 %v1934, %v1934
    %v2069 = vmul.f32 %v1935, %v1935
    %v2070 = vmul.f32 %v1936, %v1936
    %v2071 = vmul.f32 %v1937, %v1937
    %v2072 = vmul.f32 %v1938, %v1938
    %v2073 = vmul.f32 %v1939, %v1939
    %v2074 = vmul.f32 %v1940, %v1940
    %v2075 = vmul.f32 %v1941, %v1941
    %v2076 = vmul.f32 %v1942, %v1942
    %v2077 = vmul.f32 %v1943, %v1943
    %v2078 = vmul.f32 %v1944, %v1944
    %v2079 = vmul.f32 %v1945, %v1945
    %v2080 = vmul.f32 %v1946, %v1946
    %v2081 = vmul.f32 %v1947, %v1947
    %v2082 = vmul.f32 %v1948, %v1948
    %v2083 = vmul.f32 %v1949, %v1949
    %v2084 = vmul.f32 %v1950, %v1950
    %v2085 = vmul.f32 %v1951, %v1951
    %v2086 = vmul.f32 %v1952, %v1952
    %v2087 = vmul.f32 %v1953, %v1953
    %v2088 = vmul.f32 %v1954, %v1954
    %v2089 = vmul.f32 %v1955, %v1955
    %v2090 = vmul.f32 %v1956, %v1956
    %v2091 = vmul.f32 %v1957, %v1957
    %v2092 = vmul.f32 %v1958, %v1958
    %v2093 = vmul.f32 %v1959, %v1959
    %v2094 = vmul.f32 %v1960, %v1960
    %v2095 = vmul.f32 %v1961, %v1961
    %v2096 = vmul.f32 %v1962, %v1962
    %v2097 = vmul.f32 %v1963, %v1963
    %v2098 = vmul.f32 %v1964, %v1964
    %v2099 = vmul.f32 %v1965, %v1965
    %v2100 = vmul.f32 %v1966, %v1966
    %v2101 = vmul.f32 %v1967, %v1967
    %v2102 = vmul.f32 %v1968, %v1968
    %v2103 = vmul.f32 %v1969, %v1969
    %v2104 = vmul.f32 %v1970, %v1970
    %v2105 = vmul.f32 %v1971, %v1971
    %v2106 = vmul.f32 %v1972, %v1972
    %v2107 = vmul.f32 %v1973, %v1973
    %v2108 = vmul.f32 %v1974, %v1974
    %v2109 = vmul.f32 %v1975, %v1975
    %v2110 = vadd.f32 %v2046, %v2047
    %v2111 = vadd.f32 %v2110, %v2048
    %v2112 = vadd.f32 %v2111, %v2049
    %v2113 = vadd.f32 %v2112, %v2050
    %v2114 = vadd.f32 %v2113, %v2051
    %v2115 = vadd.f32 %v2114, %v2052
    %v2116 = vadd.f32 %v2115, %v2053
    %v2117 = vadd.f32 %v2116, %v2054
    %v2118 = vadd.f32 %v2117, %v2055
    %v2119 = vadd.f32 %v2118, %v2056
    %v2120 = vadd.f32 %v2119, %v2057
    %v2121 = vadd.f32 %v2120, %v2058
    %v2122 = vadd.f32 %v2121, %v2059
    %v2123 = vadd.f32 %v2122, %v2060
    %v2124 = vadd.f32 %v2123, %v2061
    %v2125 = vadd.f32 %v2124, %v2062
    %v2126 = vadd.f32 %v2125, %v2063
    %v2127 = vadd.f32 %v2126, %v2064
    %v2128 = vadd.f32 %v2127, %v2065
    %v2129 = vadd.f32 %v2128, %v2066
    %v2130 = vadd.f32 %v2129, %v2067
    %v2131 = vadd.f32 %v2130, %v2068
    %v2132 = vadd.f32 %v2131, %v2069
    %v2133 = vadd.f32 %v2132, %v2070
    %v2134 = vadd.f32 %v2133, %v2071
    %v2135 = vadd.f32 %v2134, %v2072
    %v2136 = vadd.f32 %v2135, %v2073
    %v2137 = vadd.f32 %v2136, %v2074
    %v2138 = vadd.f32 %v2137, %v2075
    %v2139 = vadd.f32 %v2138, %v2076
    %v2140 = vadd.f32 %v2139, %v2077
    %v2141 = vadd.f32 %v2140, %v2078
    %v2142 = vadd.f32 %v2141, %v2079
    %v2143 = vadd.f32 %v2142, %v2080
    %v2144 = vadd.f32 %v2143, %v2081
    %v2145 = vadd.f32 %v2144, %v2082
    %v2146 = vadd.f32 %v2145, %v2083
    %v2147 = vadd.f32 %v2146, %v2084
    %v2148 = vadd.f32 %v2147, %v2085
    %v2149 = vadd.f32 %v2148, %v2086
    %v2150 = vadd.f32 %v2149, %v2087
    %v2151 = vadd.f32 %v2150, %v2088
    %v2152 = vadd.f32 %v2151, %v2089
    %v2153 = vadd.f32 %v2152, %v2090
    %v2154 = vadd.f32 %v2153, %v2091
    %v2155 = vadd.f32 %v2154, %v2092
    %v2156 = vadd.f32 %v2155, %v2093
    %v2157 = vadd.f32 %v2156, %v2094
    %v2158 = vadd.f32 %v2157, %v2095
    %v2159 = vadd.f32 %v2158, %v2096
    %v2160 = vadd.f32 %v2159, %v2097
    %v2161 = vadd.f32 %v2160, %v2098
    %v2162 = vadd.f32 %v2161, %v2099
    %v2163 = vadd.f32 %v2162, %v2100
    %v2164 = vadd.f32 %v2163, %v2101
    %v2165 = vadd.f32 %v2164, %v2102
    %v2166 = vadd.f32 %v2165, %v2103
    %v2167 = vadd.f32 %v2166, %v2104
    %v2168 = vadd.f32 %v2167, %v2105
    %v2169 = vadd.f32 %v2168, %v2106
    %v2170 = vadd.f32 %v2169, %v2107
    %v2171 = vadd.f32 %v2170, %v2108
    %v2172 = vadd.f32 %v2171, %v2109
    %v2173 = vrot.slane %v2172, 4
    %v2174 = vadd.f32 %v2172, %v2173
    %v2175 = vrot.slane %v2174, 2
    %v2176 = vadd.f32 %v2174, %v2175
    %v2177 = vrot.slane %v2176, 1
    %v2178 = vadd.f32 %v2176, %v2177
    %v2179 = vmul.f32 %v2178, %v690
    %v2180 = vmul.f32 %v2045, %v2045
    %v2181 = vsub.f32 %v2179, %v2180
    %v2182 = vmax.f32 %v2181, 0.0
    %v2183 = vsub.f32 %v1912, %v2045
    %v2184 = vsub.f32 %v1913, %v2045
    %v2185 = vsub.f32 %v1914, %v2045
    %v2186 = vsub.f32 %v1915, %v2045
    %v2187 = vsub.f32 %v1916, %v2045
    %v2188 = vsub.f32 %v1917, %v2045
    %v2189 = vsub.f32 %v1918, %v2045
    %v2190 = vsub.f32 %v1919, %v2045
    %v2191 = vsub.f32 %v1920, %v2045
    %v2192 = vsub.f32 %v1921, %v2045
    %v2193 = vsub.f32 %v1922, %v2045
    %v2194 = vsub.f32 %v1923, %v2045
    %v2195 = vsub.f32 %v1924, %v2045
    %v2196 = vsub.f32 %v1925, %v2045
    %v2197 = vsub.f32 %v1926, %v2045
    %v2198 = vsub.f32 %v1927, %v2045
    %v2199 = vsub.f32 %v1928, %v2045
    %v2200 = vsub.f32 %v1929, %v2045
    %v2201 = vsub.f32 %v1930, %v2045
    %v2202 = vsub.f32 %v1931, %v2045
    %v2203 = vsub.f32 %v1932, %v2045
    %v2204 = vsub.f32 %v1933, %v2045
    %v2205 = vsub.f32 %v1934, %v2045
    %v2206 = vsub.f32 %v1935, %v2045
    %v2207 = vsub.f32 %v1936, %v2045
    %v2208 = vsub.f32 %v1937, %v2045
    %v2209 = vsub.f32 %v1938, %v2045
    %v2210 = vsub.f32 %v1939, %v2045
    %v2211 = vsub.f32 %v1940, %v2045
    %v2212 = vsub.f32 %v1941, %v2045
    %v2213 = vsub.f32 %v1942, %v2045
    %v2214 = vsub.f32 %v1943, %v2045
    %v2215 = vsub.f32 %v1944, %v2045
    %v2216 = vsub.f32 %v1945, %v2045
    %v2217 = vsub.f32 %v1946, %v2045
    %v2218 = vsub.f32 %v1947, %v2045
    %v2219 = vsub.f32 %v1948, %v2045
    %v2220 = vsub.f32 %v1949, %v2045
    %v2221 = vsub.f32 %v1950, %v2045
    %v2222 = vsub.f32 %v1951, %v2045
    %v2223 = vsub.f32 %v1952, %v2045
    %v2224 = vsub.f32 %v1953, %v2045
    %v2225 = vsub.f32 %v1954, %v2045
    %v2226 = vsub.f32 %v1955, %v2045
    %v2227 = vsub.f32 %v1956, %v2045
    %v2228 = vsub.f32 %v1957, %v2045
    %v2229 = vsub.f32 %v1958, %v2045
    %v2230 = vsub.f32 %v1959, %v2045
    %v2231 = vsub.f32 %v1960, %v2045
    %v2232 = vsub.f32 %v1961, %v2045
    %v2233 = vsub.f32 %v1962, %v2045
    %v2234 = vsub.f32 %v1963, %v2045
    %v2235 = vsub.f32 %v1964, %v2045
    %v2236 = vsub.f32 %v1965, %v2045
    %v2237 = vsub.f32 %v1966, %v2045
    %v2238 = vsub.f32 %v1967, %v2045
    %v2239 = vsub.f32 %v1968, %v2045
    %v2240 = vsub.f32 %v1969, %v2045
    %v2241 = vsub.f32 %v1970, %v2045
    %v2242 = vsub.f32 %v1971, %v2045
    %v2243 = vsub.f32 %v1972, %v2045
    %v2244 = vsub.f32 %v1973, %v2045
    %v2245 = vsub.f32 %v1974, %v2045
    %v2246 = vsub.f32 %v1975, %v2045
    %v2247 = vadd.f32 %v2182, 1e-05
    %v2248 = vrsqrt.pop %v2247
    %v2249 = vmul.f32 %v2248, %v2247
    %v2250 = vmul.f32 %v2249, %v2248
    %v2251 = vmul.f32 0.5, %v2250
    %v2252 = vsub.f32 1.5, %v2251
    %v2253 = vmul.f32 %v2248, %v2252
    %vm2254 = vweird.f32 %v2247
    %vm2255 = vweird.f32 %v2248
    %vm2256 = vmor %vm2254, %vm2255
    %v2257 = vsel %vm2256, %v2248, %v2253
    %v2258 = vmul.f32 %v2183, %v2257
    %v2259 = vmul.f32 %v2184, %v2257
    %v2260 = vmul.f32 %v2185, %v2257
    %v2261 = vmul.f32 %v2186, %v2257
    %v2262 = vmul.f32 %v2187, %v2257
    %v2263 = vmul.f32 %v2188, %v2257
    %v2264 = vmul.f32 %v2189, %v2257
    %v2265 = vmul.f32 %v2190, %v2257
    %v2266 = vmul.f32 %v2191, %v2257
    %v2267 = vmul.f32 %v2192, %v2257
    %v2268 = vmul.f32 %v2193, %v2257
    %v2269 = vmul.f32 %v2194, %v2257
    %v2270 = vmul.f32 %v2195, %v2257
    %v2271 = vmul.f32 %v2196, %v2257
    %v2272 = vmul.f32 %v2197, %v2257
    %v2273 = vmul.f32 %v2198, %v2257
    %v2274 = vmul.f32 %v2199, %v2257
    %v2275 = vmul.f32 %v2200, %v2257
    %v2276 = vmul.f32 %v2201, %v2257
    %v2277 = vmul.f32 %v2202, %v2257
    %v2278 = vmul.f32 %v2203, %v2257
    %v2279 = vmul.f32 %v2204, %v2257
    %v2280 = vmul.f32 %v2205, %v2257
    %v2281 = vmul.f32 %v2206, %v2257
    %v2282 = vmul.f32 %v2207, %v2257
    %v2283 = vmul.f32 %v2208, %v2257
    %v2284 = vmul.f32 %v2209, %v2257
    %v2285 = vmul.f32 %v2210, %v2257
    %v2286 = vmul.f32 %v2211, %v2257
    %v2287 = vmul.f32 %v2212, %v2257
    %v2288 = vmul.f32 %v2213, %v2257
    %v2289 = vmul.f32 %v2214, %v2257
    %v2290 = vmul.f32 %v2215, %v2257
    %v2291 = vmul.f32 %v2216, %v2257
    %v2292 = vmul.f32 %v2217, %v2257
    %v2293 = vmul.f32 %v2218, %v2257
    %v2294 = vmul.f32 %v2219, %v2257
    %v2295 = vmul.f32 %v2220, %v2257
    %v2296 = vmul.f32 %v2221, %v2257
    %v2297 = vmul.f32 %v2222, %v2257
    %v2298 = vmul.f32 %v2223, %v2257
    %v2299 = vmul.f32 %v2224, %v2257
    %v2300 = vmul.f32 %v2225, %v2257
    %v2301 = vmul.f32 %v2226, %v2257
    %v2302 = vmul.f32 %v2227, %v2257
    %v2303 = vmul.f32 %v2228, %v2257
    %v2304 = vmul.f32 %v2229, %v2257
    %v2305 = vmul.f32 %v2230, %v2257
    %v2306 = vmul.f32 %v2231, %v2257
    %v2307 = vmul.f32 %v2232, %v2257
    %v2308 = vmul.f32 %v2233, %v2257
    %v2309 = vmul.f32 %v2234, %v2257
    %v2310 = vmul.f32 %v2235, %v2257
    %v2311 = vmul.f32 %v2236, %v2257
    %v2312 = vmul.f32 %v2237, %v2257
    %v2313 = vmul.f32 %v2238, %v2257
    %v2314 = vmul.f32 %v2239, %v2257
    %v2315 = vmul.f32 %v2240, %v2257
    %v2316 = vmul.f32 %v2241, %v2257
    %v2317 = vmul.f32 %v2242, %v2257
    %v2318 = vmul.f32 %v2243, %v2257
    %v2319 = vmul.f32 %v2244, %v2257
    %v2320 = vmul.f32 %v2245, %v2257
    %v2321 = vmul.f32 %v2246, %v2257
    %v2322 = vpack.c.bf16 %v2259, %v2258
    %v2323 = vpack.c.bf16 %v2261, %v2260
    %v2324 = vpack.c.bf16 %v2263, %v2262
    %v2325 = vpack.c.bf16 %v2265, %v2264
    %v2326 = vpack.c.bf16 %v2267, %v2266
    %v2327 = vpack.c.bf16 %v2269, %v2268
    %v2328 = vpack.c.bf16 %v2271, %v2270
    %v2329 = vpack.c.bf16 %v2273, %v2272
    %v2330 = vpack.c.bf16 %v2275, %v2274
    %v2331 = vpack.c.bf16 %v2277, %v2276
    %v2332 = vpack.c.bf16 %v2279, %v2278
    %v2333 = vpack.c.bf16 %v2281, %v2280
    %v2334 = vpack.c.bf16 %v2283, %v2282
    %v2335 = vpack.c.bf16 %v2285, %v2284
    %v2336 = vpack.c.bf16 %v2287, %v2286
    %v2337 = vpack.c.bf16 %v2289, %v2288
    %v2338 = vpack.c.bf16 %v2291, %v2290
    %v2339 = vpack.c.bf16 %v2293, %v2292
    %v2340 = vpack.c.bf16 %v2295, %v2294
    %v2341 = vpack.c.bf16 %v2297, %v2296
    %v2342 = vpack.c.bf16 %v2299, %v2298
    %v2343 = vpack.c.bf16 %v2301, %v2300
    %v2344 = vpack.c.bf16 %v2303, %v2302
    %v2345 = vpack.c.bf16 %v2305, %v2304
    %v2346 = vpack.c.bf16 %v2307, %v2306
    %v2347 = vpack.c.bf16 %v2309, %v2308
    %v2348 = vpack.c.bf16 %v2311, %v2310
    %v2349 = vpack.c.bf16 %v2313, %v2312
    %v2350 = vpack.c.bf16 %v2315, %v2314
    %v2351 = vpack.c.bf16 %v2317, %v2316
    %v2352 = vpack.c.bf16 %v2319, %v2318
    %v2353 = vpack.c.bf16 %v2321, %v2320
    %s2354 = scalar_lea.vmem [#allocation5], 192
    %v2355 = vld [vmem:[%s2354] sm:$0xf]
    %v2356 = vld [vmem:[%s2354 + $0x4] sm:$0xf]
    %v2357 = vld [vmem:[%s2354 + $0x8] sm:$0xf]
    %v2358 = vld [vmem:[%s2354 + $0xc] sm:$0xf]
    %v2359 = vld [vmem:[%s2354 + $0x10] sm:$0xf]
    %v2360 = vld [vmem:[%s2354 + $0x14] sm:$0xf]
    %v2361 = vld [vmem:[%s2354 + $0x18] sm:$0xf]
    %v2362 = vld [vmem:[%s2354 + $0x1c] sm:$0xf]
    %v2363 = vld [vmem:[%s2354 + $0x20] sm:$0xf]
    %v2364 = vld [vmem:[%s2354 + $0x24] sm:$0xf]
    %v2365 = vld [vmem:[%s2354 + $0x28] sm:$0xf]
    %v2366 = vld [vmem:[%s2354 + $0x2c] sm:$0xf]
    %v2367 = vld [vmem:[%s2354 + $0x30] sm:$0xf]
    %v2368 = vld [vmem:[%s2354 + $0x34] sm:$0xf]
    %v2369 = vld [vmem:[%s2354 + $0x38] sm:$0xf]
    %v2370 = vld [vmem:[%s2354 + $0x3c] sm:$0xf]
    %v2371 = vperm.slane %v60, 3
    %v2388 = vunpack.c.l.b16 %v2355
    %v2389 = vunpack.c.l.b16 %v2356
    %v2390 = vunpack.c.l.b16 %v2357
    %v2391 = vunpack.c.l.b16 %v2358
    %v2392 = vunpack.c.l.b16 %v2359
    %v2393 = vunpack.c.l.b16 %v2360
    %v2394 = vunpack.c.l.b16 %v2361
    %v2395 = vunpack.c.l.b16 %v2362
    %v2396 = vunpack.c.l.b16 %v2363
    %v2397 = vunpack.c.l.b16 %v2364
    %v2398 = vunpack.c.l.b16 %v2365
    %v2399 = vunpack.c.l.b16 %v2366
    %v2400 = vunpack.c.l.b16 %v2367
    %v2401 = vunpack.c.l.b16 %v2368
    %v2402 = vunpack.c.l.b16 %v2369
    %v2403 = vunpack.c.l.b16 %v2370
    %v2404 = vpack.c.b16 %v2389, %v2388
    %v2405 = vpack.c.b16 %v2391, %v2390
    %v2406 = vpack.c.b16 %v2393, %v2392
    %v2407 = vpack.c.b16 %v2395, %v2394
    %v2408 = vpack.c.b16 %v2397, %v2396
    %v2409 = vpack.c.b16 %v2399, %v2398
    %v2410 = vpack.c.b16 %v2401, %v2400
    %v2411 = vpack.c.b16 %v2403, %v2402
    %2420 = vmatpush.bf16.msra.mxu0 %v2411
    %2421 = vmatpush.bf16.msra.mxu0 %v2410
    %2422 = vmatpush.bf16.msra.mxu0 %v2409
    %2423 = vmatpush.bf16.msra.mxu0 %v2408
    %2424 = vmatpush.bf16.msra.mxu0 %v2407
    %2425 = vmatpush.bf16.msra.mxu0 %v2406
    %2426 = vmatpush.bf16.msra.mxu0 %v2405
    %2427 = vmatpush.bf16.msra.mxu0 %v2404
    %2428 = vmatmul.bf16.gmra.mxu0 %v2322
    %v2429 = vpop.f32.mrf.mxu0
    %v2430 = vadd.f32 %v2371, %v2429
    %v2431 = vpop.f32.mrf.mxu0
    %v2432 = vadd.f32 %v2371, %v2431
    %2433 = vmatmul.bf16.gmra.mxu0 %v2323
    %v2434 = vpop.f32.mrf.mxu0
    %v2435 = vadd.f32 %v2371, %v2434
    %v2436 = vpop.f32.mrf.mxu0
    %v2437 = vadd.f32 %v2371, %v2436
    %2438 = vmatmul.bf16.gmra.mxu0 %v2324
    %v2439 = vpop.f32.mrf.mxu0
    %v2440 = vadd.f32 %v2371, %v2439
    %v2441 = vpop.f32.mrf.mxu0
    %v2442 = vadd.f32 %v2371, %v2441
    %2443 = vmatmul.bf16.gmra.mxu0 %v2325
    %v2444 = vpop.f32.mrf.mxu0
    %v2445 = vadd.f32 %v2371, %v2444
    %v2446 = vpop.f32.mrf.mxu0
    %v2447 = vadd.f32 %v2371, %v2446
    %2448 = vmatmul.bf16.gmra.mxu0 %v2326
    %v2449 = vpop.f32.mrf.mxu0
    %v2450 = vadd.f32 %v2371, %v2449
    %v2451 = vpop.f32.mrf.mxu0
    %v2452 = vadd.f32 %v2371, %v2451
    %2453 = vmatmul.bf16.gmra.mxu0 %v2327
    %v2454 = vpop.f32.mrf.mxu0
    %v2455 = vadd.f32 %v2371, %v2454
    %v2456 = vpop.f32.mrf.mxu0
    %v2457 = vadd.f32 %v2371, %v2456
    %2458 = vmatmul.bf16.gmra.mxu0 %v2328
    %v2459 = vpop.f32.mrf.mxu0
    %v2460 = vadd.f32 %v2371, %v2459
    %v2461 = vpop.f32.mrf.mxu0
    %v2462 = vadd.f32 %v2371, %v2461
    %2463 = vmatmul.bf16.gmra.mxu0 %v2329
    %v2464 = vpop.f32.mrf.mxu0
    %v2465 = vadd.f32 %v2371, %v2464
    %v2466 = vpop.f32.mrf.mxu0
    %v2467 = vadd.f32 %v2371, %v2466
    %2468 = vmatmul.bf16.gmra.mxu0 %v2330
    %v2469 = vpop.f32.mrf.mxu0
    %v2470 = vadd.f32 %v2371, %v2469
    %v2471 = vpop.f32.mrf.mxu0
    %v2472 = vadd.f32 %v2371, %v2471
    %2473 = vmatmul.bf16.gmra.mxu0 %v2331
    %v2474 = vpop.f32.mrf.mxu0
    %v2475 = vadd.f32 %v2371, %v2474
    %v2476 = vpop.f32.mrf.mxu0
    %v2477 = vadd.f32 %v2371, %v2476
    %2478 = vmatmul.bf16.gmra.mxu0 %v2332
    %v2479 = vpop.f32.mrf.mxu0
    %v2480 = vadd.f32 %v2371, %v2479
    %v2481 = vpop.f32.mrf.mxu0
    %v2482 = vadd.f32 %v2371, %v2481
    %2483 = vmatmul.bf16.gmra.mxu0 %v2333
    %v2484 = vpop.f32.mrf.mxu0
    %v2485 = vadd.f32 %v2371, %v2484
    %v2486 = vpop.f32.mrf.mxu0
    %v2487 = vadd.f32 %v2371, %v2486
    %2488 = vmatmul.bf16.gmra.mxu0 %v2334
    %v2489 = vpop.f32.mrf.mxu0
    %v2490 = vadd.f32 %v2371, %v2489
    %v2491 = vpop.f32.mrf.mxu0
    %v2492 = vadd.f32 %v2371, %v2491
    %2493 = vmatmul.bf16.gmra.mxu0 %v2335
    %v2494 = vpop.f32.mrf.mxu0
    %v2495 = vadd.f32 %v2371, %v2494
    %v2496 = vpop.f32.mrf.mxu0
    %v2497 = vadd.f32 %v2371, %v2496
    %2498 = vmatmul.bf16.gmra.mxu0 %v2336
    %v2499 = vpop.f32.mrf.mxu0
    %v2500 = vadd.f32 %v2371, %v2499
    %v2501 = vpop.f32.mrf.mxu0
    %v2502 = vadd.f32 %v2371, %v2501
    %2503 = vmatmul.bf16.gmra.mxu0 %v2337
    %v2504 = vpop.f32.mrf.mxu0
    %v2505 = vadd.f32 %v2371, %v2504
    %v2506 = vpop.f32.mrf.mxu0
    %v2507 = vadd.f32 %v2371, %v2506
    %2508 = vmatmul.bf16.gmra.mxu0 %v2338
    %v2509 = vpop.f32.mrf.mxu0
    %v2510 = vadd.f32 %v2371, %v2509
    %v2511 = vpop.f32.mrf.mxu0
    %v2512 = vadd.f32 %v2371, %v2511
    %2513 = vmatmul.bf16.gmra.mxu0 %v2339
    %v2514 = vpop.f32.mrf.mxu0
    %v2515 = vadd.f32 %v2371, %v2514
    %v2516 = vpop.f32.mrf.mxu0
    %v2517 = vadd.f32 %v2371, %v2516
    %2518 = vmatmul.bf16.gmra.mxu0 %v2340
    %v2519 = vpop.f32.mrf.mxu0
    %v2520 = vadd.f32 %v2371, %v2519
    %v2521 = vpop.f32.mrf.mxu0
    %v2522 = vadd.f32 %v2371, %v2521
    %2523 = vmatmul.bf16.gmra.mxu0 %v2341
    %v2524 = vpop.f32.mrf.mxu0
    %v2525 = vadd.f32 %v2371, %v2524
    %v2526 = vpop.f32.mrf.mxu0
    %v2527 = vadd.f32 %v2371, %v2526
    %2528 = vmatmul.bf16.gmra.mxu0 %v2342
    %v2529 = vpop.f32.mrf.mxu0
    %v2530 = vadd.f32 %v2371, %v2529
    %v2531 = vpop.f32.mrf.mxu0
    %v2532 = vadd.f32 %v2371, %v2531
    %2533 = vmatmul.bf16.gmra.mxu0 %v2343
    %v2534 = vpop.f32.mrf.mxu0
    %v2535 = vadd.f32 %v2371, %v2534
    %v2536 = vpop.f32.mrf.mxu0
    %v2537 = vadd.f32 %v2371, %v2536
    %2538 = vmatmul.bf16.gmra.mxu0 %v2344
    %v2539 = vpop.f32.mrf.mxu0
    %v2540 = vadd.f32 %v2371, %v2539
    %v2541 = vpop.f32.mrf.mxu0
    %v2542 = vadd.f32 %v2371, %v2541
    %2543 = vmatmul.bf16.gmra.mxu0 %v2345
    %v2544 = vpop.f32.mrf.mxu0
    %v2545 = vadd.f32 %v2371, %v2544
    %v2546 = vpop.f32.mrf.mxu0
    %v2547 = vadd.f32 %v2371, %v2546
    %2548 = vmatmul.bf16.gmra.mxu0 %v2346
    %v2549 = vpop.f32.mrf.mxu0
    %v2550 = vadd.f32 %v2371, %v2549
    %v2551 = vpop.f32.mrf.mxu0
    %v2552 = vadd.f32 %v2371, %v2551
    %2553 = vmatmul.bf16.gmra.mxu0 %v2347
    %v2554 = vpop.f32.mrf.mxu0
    %v2555 = vadd.f32 %v2371, %v2554
    %v2556 = vpop.f32.mrf.mxu0
    %v2557 = vadd.f32 %v2371, %v2556
    %2558 = vmatmul.bf16.gmra.mxu0 %v2348
    %v2559 = vpop.f32.mrf.mxu0
    %v2560 = vadd.f32 %v2371, %v2559
    %v2561 = vpop.f32.mrf.mxu0
    %v2562 = vadd.f32 %v2371, %v2561
    %2563 = vmatmul.bf16.gmra.mxu0 %v2349
    %v2564 = vpop.f32.mrf.mxu0
    %v2565 = vadd.f32 %v2371, %v2564
    %v2566 = vpop.f32.mrf.mxu0
    %v2567 = vadd.f32 %v2371, %v2566
    %2568 = vmatmul.bf16.gmra.mxu0 %v2350
    %v2569 = vpop.f32.mrf.mxu0
    %v2570 = vadd.f32 %v2371, %v2569
    %v2571 = vpop.f32.mrf.mxu0
    %v2572 = vadd.f32 %v2371, %v2571
    %2573 = vmatmul.bf16.gmra.mxu0 %v2351
    %v2574 = vpop.f32.mrf.mxu0
    %v2575 = vadd.f32 %v2371, %v2574
    %v2576 = vpop.f32.mrf.mxu0
    %v2577 = vadd.f32 %v2371, %v2576
    %2578 = vmatmul.bf16.gmra.mxu0 %v2352
    %v2579 = vpop.f32.mrf.mxu0
    %v2580 = vadd.f32 %v2371, %v2579
    %v2581 = vpop.f32.mrf.mxu0
    %v2582 = vadd.f32 %v2371, %v2581
    %2583 = vmatmul.bf16.gmra.mxu0 %v2353
    %v2584 = vpop.f32.mrf.mxu0
    %v2585 = vadd.f32 %v2371, %v2584
    %v2586 = vpop.f32.mrf.mxu0
    %v2587 = vadd.f32 %v2371, %v2586
    %2588 = vdwg.mxu0
    %v2589 = vmax.f32 %v2430, 0.0
    %v2590 = vmax.f32 %v2432, 0.0
    %v2591 = vmax.f32 %v2435, 0.0
    %v2592 = vmax.f32 %v2437, 0.0
    %v2593 = vmax.f32 %v2440, 0.0
    %v2594 = vmax.f32 %v2442, 0.0
    %v2595 = vmax.f32 %v2445, 0.0
    %v2596 = vmax.f32 %v2447, 0.0
    %v2597 = vmax.f32 %v2450, 0.0
    %v2598 = vmax.f32 %v2452, 0.0
    %v2599 = vmax.f32 %v2455, 0.0
    %v2600 = vmax.f32 %v2457, 0.0
    %v2601 = vmax.f32 %v2460, 0.0
    %v2602 = vmax.f32 %v2462, 0.0
    %v2603 = vmax.f32 %v2465, 0.0
    %v2604 = vmax.f32 %v2467, 0.0
    %v2605 = vmax.f32 %v2470, 0.0
    %v2606 = vmax.f32 %v2472, 0.0
    %v2607 = vmax.f32 %v2475, 0.0
    %v2608 = vmax.f32 %v2477, 0.0
    %v2609 = vmax.f32 %v2480, 0.0
    %v2610 = vmax.f32 %v2482, 0.0
    %v2611 = vmax.f32 %v2485, 0.0
    %v2612 = vmax.f32 %v2487, 0.0
    %v2613 = vmax.f32 %v2490, 0.0
    %v2614 = vmax.f32 %v2492, 0.0
    %v2615 = vmax.f32 %v2495, 0.0
    %v2616 = vmax.f32 %v2497, 0.0
    %v2617 = vmax.f32 %v2500, 0.0
    %v2618 = vmax.f32 %v2502, 0.0
    %v2619 = vmax.f32 %v2505, 0.0
    %v2620 = vmax.f32 %v2507, 0.0
    %v2621 = vmax.f32 %v2510, 0.0
    %v2622 = vmax.f32 %v2512, 0.0
    %v2623 = vmax.f32 %v2515, 0.0
    %v2624 = vmax.f32 %v2517, 0.0
    %v2625 = vmax.f32 %v2520, 0.0
    %v2626 = vmax.f32 %v2522, 0.0
    %v2627 = vmax.f32 %v2525, 0.0
    %v2628 = vmax.f32 %v2527, 0.0
    %v2629 = vmax.f32 %v2530, 0.0
    %v2630 = vmax.f32 %v2532, 0.0
    %v2631 = vmax.f32 %v2535, 0.0
    %v2632 = vmax.f32 %v2537, 0.0
    %v2633 = vmax.f32 %v2540, 0.0
    %v2634 = vmax.f32 %v2542, 0.0
    %v2635 = vmax.f32 %v2545, 0.0
    %v2636 = vmax.f32 %v2547, 0.0
    %v2637 = vmax.f32 %v2550, 0.0
    %v2638 = vmax.f32 %v2552, 0.0
    %v2639 = vmax.f32 %v2555, 0.0
    %v2640 = vmax.f32 %v2557, 0.0
    %v2641 = vmax.f32 %v2560, 0.0
    %v2642 = vmax.f32 %v2562, 0.0
    %v2643 = vmax.f32 %v2565, 0.0
    %v2644 = vmax.f32 %v2567, 0.0
    %v2645 = vmax.f32 %v2570, 0.0
    %v2646 = vmax.f32 %v2572, 0.0
    %v2647 = vmax.f32 %v2575, 0.0
    %v2648 = vmax.f32 %v2577, 0.0
    %v2649 = vmax.f32 %v2580, 0.0
    %v2650 = vmax.f32 %v2582, 0.0
    %v2651 = vmax.f32 %v2585, 0.0
    %v2652 = vmax.f32 %v2587, 0.0
    %v2653 = vpack.c.bf16 %v2590, %v2589
    %v2654 = vpack.c.bf16 %v2592, %v2591
    %v2655 = vpack.c.bf16 %v2594, %v2593
    %v2656 = vpack.c.bf16 %v2596, %v2595
    %v2657 = vpack.c.bf16 %v2598, %v2597
    %v2658 = vpack.c.bf16 %v2600, %v2599
    %v2659 = vpack.c.bf16 %v2602, %v2601
    %v2660 = vpack.c.bf16 %v2604, %v2603
    %v2661 = vpack.c.bf16 %v2606, %v2605
    %v2662 = vpack.c.bf16 %v2608, %v2607
    %v2663 = vpack.c.bf16 %v2610, %v2609
    %v2664 = vpack.c.bf16 %v2612, %v2611
    %v2665 = vpack.c.bf16 %v2614, %v2613
    %v2666 = vpack.c.bf16 %v2616, %v2615
    %v2667 = vpack.c.bf16 %v2618, %v2617
    %v2668 = vpack.c.bf16 %v2620, %v2619
    %v2669 = vpack.c.bf16 %v2622, %v2621
    %v2670 = vpack.c.bf16 %v2624, %v2623
    %v2671 = vpack.c.bf16 %v2626, %v2625
    %v2672 = vpack.c.bf16 %v2628, %v2627
    %v2673 = vpack.c.bf16 %v2630, %v2629
    %v2674 = vpack.c.bf16 %v2632, %v2631
    %v2675 = vpack.c.bf16 %v2634, %v2633
    %v2676 = vpack.c.bf16 %v2636, %v2635
    %v2677 = vpack.c.bf16 %v2638, %v2637
    %v2678 = vpack.c.bf16 %v2640, %v2639
    %v2679 = vpack.c.bf16 %v2642, %v2641
    %v2680 = vpack.c.bf16 %v2644, %v2643
    %v2681 = vpack.c.bf16 %v2646, %v2645
    %v2682 = vpack.c.bf16 %v2648, %v2647
    %v2683 = vpack.c.bf16 %v2650, %v2649
    %v2684 = vpack.c.bf16 %v2652, %v2651
    %s2685 = scalar_lea.vmem [#allocation5], 256
    %v2686 = vld [vmem:[%s2685] sm:$0xf]
    %v2687 = vld [vmem:[%s2685 + $0x4] sm:$0xf]
    %v2688 = vld [vmem:[%s2685 + $0x8] sm:$0xf]
    %v2689 = vld [vmem:[%s2685 + $0xc] sm:$0xf]
    %v2690 = vld [vmem:[%s2685 + $0x10] sm:$0xf]
    %v2691 = vld [vmem:[%s2685 + $0x14] sm:$0xf]
    %v2692 = vld [vmem:[%s2685 + $0x18] sm:$0xf]
    %v2693 = vld [vmem:[%s2685 + $0x1c] sm:$0xf]
    %v2694 = vld [vmem:[%s2685 + $0x20] sm:$0xf]
    %v2695 = vld [vmem:[%s2685 + $0x24] sm:$0xf]
    %v2696 = vld [vmem:[%s2685 + $0x28] sm:$0xf]
    %v2697 = vld [vmem:[%s2685 + $0x2c] sm:$0xf]
    %v2698 = vld [vmem:[%s2685 + $0x30] sm:$0xf]
    %v2699 = vld [vmem:[%s2685 + $0x34] sm:$0xf]
    %v2700 = vld [vmem:[%s2685 + $0x38] sm:$0xf]
    %v2701 = vld [vmem:[%s2685 + $0x3c] sm:$0xf]
    %v2702 = vperm.slane %v60, 4
    %v2719 = vunpack.c.l.b16 %v2686
    %v2720 = vunpack.c.l.b16 %v2687
    %v2721 = vunpack.c.l.b16 %v2688
    %v2722 = vunpack.c.l.b16 %v2689
    %v2723 = vunpack.c.l.b16 %v2690
    %v2724 = vunpack.c.l.b16 %v2691
    %v2725 = vunpack.c.l.b16 %v2692
    %v2726 = vunpack.c.l.b16 %v2693
    %v2727 = vunpack.c.l.b16 %v2694
    %v2728 = vunpack.c.l.b16 %v2695
    %v2729 = vunpack.c.l.b16 %v2696
    %v2730 = vunpack.c.l.b16 %v2697
    %v2731 = vunpack.c.l.b16 %v2698
    %v2732 = vunpack.c.l.b16 %v2699
    %v2733 = vunpack.c.l.b16 %v2700
    %v2734 = vunpack.c.l.b16 %v2701
    %v2735 = vpack.c.b16 %v2720, %v2719
    %v2736 = vpack.c.b16 %v2722, %v2721
    %v2737 = vpack.c.b16 %v2724, %v2723
    %v2738 = vpack.c.b16 %v2726, %v2725
    %v2739 = vpack.c.b16 %v2728, %v2727
    %v2740 = vpack.c.b16 %v2730, %v2729
    %v2741 = vpack.c.b16 %v2732, %v2731
    %v2742 = vpack.c.b16 %v2734, %v2733
    %2751 = vmatpush.bf16.msra.mxu0 %v2742
    %2752 = vmatpush.bf16.msra.mxu0 %v2741
    %2753 = vmatpush.bf16.msra.mxu0 %v2740
    %2754 = vmatpush.bf16.msra.mxu0 %v2739
    %2755 = vmatpush.bf16.msra.mxu0 %v2738
    %2756 = vmatpush.bf16.msra.mxu0 %v2737
    %2757 = vmatpush.bf16.msra.mxu0 %v2736
    %2758 = vmatpush.bf16.msra.mxu0 %v2735
    %2759 = vmatmul.bf16.gmra.mxu0 %v2653
    %v2760 = vpop.f32.mrf.mxu0
    %v2761 = vadd.f32 %v2702, %v2760
    %v2762 = vpop.f32.mrf.mxu0
    %v2763 = vadd.f32 %v2702, %v2762
    %2764 = vmatmul.bf16.gmra.mxu0 %v2654
    %v2765 = vpop.f32.mrf.mxu0
    %v2766 = vadd.f32 %v2702, %v2765
    %v2767 = vpop.f32.mrf.mxu0
    %v2768 = vadd.f32 %v2702, %v2767
    %2769 = vmatmul.bf16.gmra.mxu0 %v2655
    %v2770 = vpop.f32.mrf.mxu0
    %v2771 = vadd.f32 %v2702, %v2770
    %v2772 = vpop.f32.mrf.mxu0
    %v2773 = vadd.f32 %v2702, %v2772
    %2774 = vmatmul.bf16.gmra.mxu0 %v2656
    %v2775 = vpop.f32.mrf.mxu0
    %v2776 = vadd.f32 %v2702, %v2775
    %v2777 = vpop.f32.mrf.mxu0
    %v2778 = vadd.f32 %v2702, %v2777
    %2779 = vmatmul.bf16.gmra.mxu0 %v2657
    %v2780 = vpop.f32.mrf.mxu0
    %v2781 = vadd.f32 %v2702, %v2780
    %v2782 = vpop.f32.mrf.mxu0
    %v2783 = vadd.f32 %v2702, %v2782
    %2784 = vmatmul.bf16.gmra.mxu0 %v2658
    %v2785 = vpop.f32.mrf.mxu0
    %v2786 = vadd.f32 %v2702, %v2785
    %v2787 = vpop.f32.mrf.mxu0
    %v2788 = vadd.f32 %v2702, %v2787
    %2789 = vmatmul.bf16.gmra.mxu0 %v2659
    %v2790 = vpop.f32.mrf.mxu0
    %v2791 = vadd.f32 %v2702, %v2790
    %v2792 = vpop.f32.mrf.mxu0
    %v2793 = vadd.f32 %v2702, %v2792
    %2794 = vmatmul.bf16.gmra.mxu0 %v2660
    %v2795 = vpop.f32.mrf.mxu0
    %v2796 = vadd.f32 %v2702, %v2795
    %v2797 = vpop.f32.mrf.mxu0
    %v2798 = vadd.f32 %v2702, %v2797
    %2799 = vmatmul.bf16.gmra.mxu0 %v2661
    %v2800 = vpop.f32.mrf.mxu0
    %v2801 = vadd.f32 %v2702, %v2800
    %v2802 = vpop.f32.mrf.mxu0
    %v2803 = vadd.f32 %v2702, %v2802
    %2804 = vmatmul.bf16.gmra.mxu0 %v2662
    %v2805 = vpop.f32.mrf.mxu0
    %v2806 = vadd.f32 %v2702, %v2805
    %v2807 = vpop.f32.mrf.mxu0
    %v2808 = vadd.f32 %v2702, %v2807
    %2809 = vmatmul.bf16.gmra.mxu0 %v2663
    %v2810 = vpop.f32.mrf.mxu0
    %v2811 = vadd.f32 %v2702, %v2810
    %v2812 = vpop.f32.mrf.mxu0
    %v2813 = vadd.f32 %v2702, %v2812
    %2814 = vmatmul.bf16.gmra.mxu0 %v2664
    %v2815 = vpop.f32.mrf.mxu0
    %v2816 = vadd.f32 %v2702, %v2815
    %v2817 = vpop.f32.mrf.mxu0
    %v2818 = vadd.f32 %v2702, %v2817
    %2819 = vmatmul.bf16.gmra.mxu0 %v2665
    %v2820 = vpop.f32.mrf.mxu0
    %v2821 = vadd.f32 %v2702, %v2820
    %v2822 = vpop.f32.mrf.mxu0
    %v2823 = vadd.f32 %v2702, %v2822
    %2824 = vmatmul.bf16.gmra.mxu0 %v2666
    %v2825 = vpop.f32.mrf.mxu0
    %v2826 = vadd.f32 %v2702, %v2825
    %v2827 = vpop.f32.mrf.mxu0
    %v2828 = vadd.f32 %v2702, %v2827
    %2829 = vmatmul.bf16.gmra.mxu0 %v2667
    %v2830 = vpop.f32.mrf.mxu0
    %v2831 = vadd.f32 %v2702, %v2830
    %v2832 = vpop.f32.mrf.mxu0
    %v2833 = vadd.f32 %v2702, %v2832
    %2834 = vmatmul.bf16.gmra.mxu0 %v2668
    %v2835 = vpop.f32.mrf.mxu0
    %v2836 = vadd.f32 %v2702, %v2835
    %v2837 = vpop.f32.mrf.mxu0
    %v2838 = vadd.f32 %v2702, %v2837
    %2839 = vmatmul.bf16.gmra.mxu0 %v2669
    %v2840 = vpop.f32.mrf.mxu0
    %v2841 = vadd.f32 %v2702, %v2840
    %v2842 = vpop.f32.mrf.mxu0
    %v2843 = vadd.f32 %v2702, %v2842
    %2844 = vmatmul.bf16.gmra.mxu0 %v2670
    %v2845 = vpop.f32.mrf.mxu0
    %v2846 = vadd.f32 %v2702, %v2845
    %v2847 = vpop.f32.mrf.mxu0
    %v2848 = vadd.f32 %v2702, %v2847
    %2849 = vmatmul.bf16.gmra.mxu0 %v2671
    %v2850 = vpop.f32.mrf.mxu0
    %v2851 = vadd.f32 %v2702, %v2850
    %v2852 = vpop.f32.mrf.mxu0
    %v2853 = vadd.f32 %v2702, %v2852
    %2854 = vmatmul.bf16.gmra.mxu0 %v2672
    %v2855 = vpop.f32.mrf.mxu0
    %v2856 = vadd.f32 %v2702, %v2855
    %v2857 = vpop.f32.mrf.mxu0
    %v2858 = vadd.f32 %v2702, %v2857
    %2859 = vmatmul.bf16.gmra.mxu0 %v2673
    %v2860 = vpop.f32.mrf.mxu0
    %v2861 = vadd.f32 %v2702, %v2860
    %v2862 = vpop.f32.mrf.mxu0
    %v2863 = vadd.f32 %v2702, %v2862
    %2864 = vmatmul.bf16.gmra.mxu0 %v2674
    %v2865 = vpop.f32.mrf.mxu0
    %v2866 = vadd.f32 %v2702, %v2865
    %v2867 = vpop.f32.mrf.mxu0
    %v2868 = vadd.f32 %v2702, %v2867
    %2869 = vmatmul.bf16.gmra.mxu0 %v2675
    %v2870 = vpop.f32.mrf.mxu0
    %v2871 = vadd.f32 %v2702, %v2870
    %v2872 = vpop.f32.mrf.mxu0
    %v2873 = vadd.f32 %v2702, %v2872
    %2874 = vmatmul.bf16.gmra.mxu0 %v2676
    %v2875 = vpop.f32.mrf.mxu0
    %v2876 = vadd.f32 %v2702, %v2875
    %v2877 = vpop.f32.mrf.mxu0
    %v2878 = vadd.f32 %v2702, %v2877
    %2879 = vmatmul.bf16.gmra.mxu0 %v2677
    %v2880 = vpop.f32.mrf.mxu0
    %v2881 = vadd.f32 %v2702, %v2880
    %v2882 = vpop.f32.mrf.mxu0
    %v2883 = vadd.f32 %v2702, %v2882
    %2884 = vmatmul.bf16.gmra.mxu0 %v2678
    %v2885 = vpop.f32.mrf.mxu0
    %v2886 = vadd.f32 %v2702, %v2885
    %v2887 = vpop.f32.mrf.mxu0
    %v2888 = vadd.f32 %v2702, %v2887
    %2889 = vmatmul.bf16.gmra.mxu0 %v2679
    %v2890 = vpop.f32.mrf.mxu0
    %v2891 = vadd.f32 %v2702, %v2890
    %v2892 = vpop.f32.mrf.mxu0
    %v2893 = vadd.f32 %v2702, %v2892
    %2894 = vmatmul.bf16.gmra.mxu0 %v2680
    %v2895 = vpop.f32.mrf.mxu0
    %v2896 = vadd.f32 %v2702, %v2895
    %v2897 = vpop.f32.mrf.mxu0
    %v2898 = vadd.f32 %v2702, %v2897
    %2899 = vmatmul.bf16.gmra.mxu0 %v2681
    %v2900 = vpop.f32.mrf.mxu0
    %v2901 = vadd.f32 %v2702, %v2900
    %v2902 = vpop.f32.mrf.mxu0
    %v2903 = vadd.f32 %v2702, %v2902
    %2904 = vmatmul.bf16.gmra.mxu0 %v2682
    %v2905 = vpop.f32.mrf.mxu0
    %v2906 = vadd.f32 %v2702, %v2905
    %v2907 = vpop.f32.mrf.mxu0
    %v2908 = vadd.f32 %v2702, %v2907
    %2909 = vmatmul.bf16.gmra.mxu0 %v2683
    %v2910 = vpop.f32.mrf.mxu0
    %v2911 = vadd.f32 %v2702, %v2910
    %v2912 = vpop.f32.mrf.mxu0
    %v2913 = vadd.f32 %v2702, %v2912
    %2914 = vmatmul.bf16.gmra.mxu0 %v2684
    %v2915 = vpop.f32.mrf.mxu0
    %v2916 = vadd.f32 %v2702, %v2915
    %v2917 = vpop.f32.mrf.mxu0
    %v2918 = vadd.f32 %v2702, %v2917
    %2919 = vdwg.mxu0
    %2920 = vst [vmem:[#allocation8] sm:$0xff] %v2761
    %2921 = vst [vmem:[#allocation8 + $0x8] sm:$0xff] %v2763
    %2922 = vst [vmem:[#allocation8 + $0x10] sm:$0xff] %v2766
    %2923 = vst [vmem:[#allocation8 + $0x18] sm:$0xff] %v2768
    %2924 = vst [vmem:[#allocation8 + $0x20] sm:$0xff] %v2771
    %2925 = vst [vmem:[#allocation8 + $0x28] sm:$0xff] %v2773
    %2926 = vst [vmem:[#allocation8 + $0x30] sm:$0xff] %v2776
    %2927 = vst [vmem:[#allocation8 + $0x38] sm:$0xff] %v2778
    %2928 = vst [vmem:[#allocation8 + $0x40] sm:$0xff] %v2781
    %2929 = vst [vmem:[#allocation8 + $0x48] sm:$0xff] %v2783
    %2930 = vst [vmem:[#allocation8 + $0x50] sm:$0xff] %v2786
    %2931 = vst [vmem:[#allocation8 + $0x58] sm:$0xff] %v2788
    %2932 = vst [vmem:[#allocation8 + $0x60] sm:$0xff] %v2791
    %2933 = vst [vmem:[#allocation8 + $0x68] sm:$0xff] %v2793
    %2934 = vst [vmem:[#allocation8 + $0x70] sm:$0xff] %v2796
    %2935 = vst [vmem:[#allocation8 + $0x78] sm:$0xff] %v2798
    %2936 = vst [vmem:[#allocation8 + $0x80] sm:$0xff] %v2801
    %2937 = vst [vmem:[#allocation8 + $0x88] sm:$0xff] %v2803
    %2938 = vst [vmem:[#allocation8 + $0x90] sm:$0xff] %v2806
    %2939 = vst [vmem:[#allocation8 + $0x98] sm:$0xff] %v2808
    %2940 = vst [vmem:[#allocation8 + $0xa0] sm:$0xff] %v2811
    %2941 = vst [vmem:[#allocation8 + $0xa8] sm:$0xff] %v2813
    %2942 = vst [vmem:[#allocation8 + $0xb0] sm:$0xff] %v2816
    %2943 = vst [vmem:[#allocation8 + $0xb8] sm:$0xff] %v2818
    %2944 = vst [vmem:[#allocation8 + $0xc0] sm:$0xff] %v2821
    %2945 = vst [vmem:[#allocation8 + $0xc8] sm:$0xff] %v2823
    %2946 = vst [vmem:[#allocation8 + $0xd0] sm:$0xff] %v2826
    %2947 = vst [vmem:[#allocation8 + $0xd8] sm:$0xff] %v2828
    %2948 = vst [vmem:[#allocation8 + $0xe0] sm:$0xff] %v2831
    %2949 = vst [vmem:[#allocation8 + $0xe8] sm:$0xff] %v2833
    %2950 = vst [vmem:[#allocation8 + $0xf0] sm:$0xff] %v2836
    %2951 = vst [vmem:[#allocation8 + $0xf8] sm:$0xff] %v2838
    %2952 = vst [vmem:[#allocation8 + $0x100] sm:$0xff] %v2841
    %2953 = vst [vmem:[#allocation8 + $0x108] sm:$0xff] %v2843
    %2954 = vst [vmem:[#allocation8 + $0x110] sm:$0xff] %v2846
    %2955 = vst [vmem:[#allocation8 + $0x118] sm:$0xff] %v2848
    %2956 = vst [vmem:[#allocation8 + $0x120] sm:$0xff] %v2851
    %2957 = vst [vmem:[#allocation8 + $0x128] sm:$0xff] %v2853
    %2958 = vst [vmem:[#allocation8 + $0x130] sm:$0xff] %v2856
    %2959 = vst [vmem:[#allocation8 + $0x138] sm:$0xff] %v2858
    %2960 = vst [vmem:[#allocation8 + $0x140] sm:$0xff] %v2861
    %2961 = vst [vmem:[#allocation8 + $0x148] sm:$0xff] %v2863
    %2962 = vst [vmem:[#allocation8 + $0x150] sm:$0xff] %v2866
    %2963 = vst [vmem:[#allocation8 + $0x158] sm:$0xff] %v2868
    %2964 = vst [vmem:[#allocation8 + $0x160] sm:$0xff] %v2871
    %2965 = vst [vmem:[#allocation8 + $0x168] sm:$0xff] %v2873
    %2966 = vst [vmem:[#allocation8 + $0x170] sm:$0xff] %v2876
    %2967 = vst [vmem:[#allocation8 + $0x178] sm:$0xff] %v2878
    %2968 = vst [vmem:[#allocation8 + $0x180] sm:$0xff] %v2881
    %2969 = vst [vmem:[#allocation8 + $0x188] sm:$0xff] %v2883
    %2970 = vst [vmem:[#allocation8 + $0x190] sm:$0xff] %v2886
    %2971 = vst [vmem:[#allocation8 + $0x198] sm:$0xff] %v2888
    %2972 = vst [vmem:[#allocation8 + $0x1a0] sm:$0xff] %v2891
    %2973 = vst [vmem:[#allocation8 + $0x1a8] sm:$0xff] %v2893
    %2974 = vst [vmem:[#allocation8 + $0x1b0] sm:$0xff] %v2896
    %2975 = vst [vmem:[#allocation8 + $0x1b8] sm:$0xff] %v2898
    %2976 = vst [vmem:[#allocation8 + $0x1c0] sm:$0xff] %v2901
    %2977 = vst [vmem:[#allocation8 + $0x1c8] sm:$0xff] %v2903
    %2978 = vst [vmem:[#allocation8 + $0x1d0] sm:$0xff] %v2906
    %2979 = vst [vmem:[#allocation8 + $0x1d8] sm:$0xff] %v2908
    %2980 = vst [vmem:[#allocation8 + $0x1e0] sm:$0xff] %v2911
    %2981 = vst [vmem:[#allocation8 + $0x1e8] sm:$0xff] %v2913
    %2982 = vst [vmem:[#allocation8 + $0x1f0] sm:$0xff] %v2916
    %2983 = vst [vmem:[#allocation8 + $0x1f8] sm:$0xff] %v2918
    // Predicated region
    $region26: #{text_latent_g.1} parent=1 // pred_check
      _
    $region27: #{text_latent_g.1} parent=1 // pred_check_branch
      %2985 = sbr.rel (0) target = $region29
    $region28: #{text_latent_g.1} parent=1 // pred_region
      %2987 = vsyncadd [#allocation4], 0
      %s2988 = sshll.u32 [#allocation8], 4
      %s2989 = int_to_ptr.vmem [resolvable:$true] %s2988
      %s2990 = sshll.u32 %s3, 4
      %s2991 = int_to_ptr.hbm [resolvable:$true] %s2990
      %2996 = dma.vmem_to_hbm [thread:$0]  %s2989, 8192, %s2991, [#allocation4], 128, 128, 8
    $region29: #{text_latent_g.1} parent=1 // pred_fallthru
      _
    // Predicated region
    $region30: #{text_latent_g.1} parent=1 // pred_check
      _
    $region31: #{text_latent_g.1} parent=1 // pred_check_branch
      %2998 = sbr.rel (0) target = $region33
    $region32: #{text_latent_g.1} parent=1 // pred_region
      %3000 = dma.done [#allocation4], 8192
    $region33: #{text_latent_g.1} parent=1 // pred_fallthru
      _
    %3001 = vsyncpa [#allocation3], 1
    %3002 = vsyncpa [#allocation6], 1
    %3003 = vsyncpa [#allocation4], 1

</llo_original>
